<compile_context>
chip_gen: v6e
topology: v6e:2x2x1
jax: 0.10.0
libtpu: 0.0.40
codegen_flags: <defaults>
</compile_context>

<pallas_src>
import functools

import jax
import jax.numpy as jnp
from jax import lax
from jax.experimental import pallas as pl
from jax.experimental.pallas import tpu as pltpu


def _dsconv_kernel(xs_ref, w_ref, b_ref, o_ref, xph_ref, *, H, W, Cin):
    """One batch element of the fused 3x3 / stride-2 conv + bias + LeakyReLU(0.1).

    xs_ref : (1, 2, H, Wout, Cin)     input, W axis split into (even, odd) column phases
    w_ref  : (9, Cin_p, Cout_p)       BN-folded weights, tap-major (dy*3+dx), lane-padded
    b_ref  : (1, Cout_p)              BN-folded bias, lane-padded
    o_ref  : (1, Hout, Wout, Cout_p)  output (lane-dense, Cout_p multiple of 128)
    xph_ref: (2, 2, Hout+1, Wout+1, Cin_p) VMEM scratch: the zero-padded, channel-padded
             input in fully phase-decomposed form:
                 xph[px, py, ry, j, c] = xpad[2*ry + py, 2*j + px, c]
             where xpad is the input with a 1-pixel zero halo.
    """
    Hout, Wout = H // 2, W // 2
    Cp = xph_ref.shape[-1]
    Cop = o_ref.shape[-1]

    # Zero the scratch: provides both the 1-pixel spatial halo and the channel padding.
    xph_ref[...] = jnp.zeros_like(xph_ref)

    # Scatter the real input into the phase-decomposed padded layout.
    #   x col 2j   (even) -> xpad col 2j+1 -> phase px=1, index j
    #   x col 2j+1 (odd)  -> xpad col 2j+2 -> phase px=0, index j+1
    #   x row 2k   (even) -> xpad row 2k+1 -> phase py=1, index k
    #   x row 2k+1 (odd)  -> xpad row 2k+2 -> phase py=0, index k+1
    xe = xs_ref[0, 0].reshape(Hout, 2, Wout, Cin)   # x even cols, split by row parity (free)
    xo = xs_ref[0, 1].reshape(Hout, 2, Wout, Cin)   # x odd  cols, split by row parity
    xph_ref[1, 1, 0:Hout, 0:Wout, 0:Cin] = xe[:, 0]            # even cols, even rows
    xph_ref[1, 0, 1:Hout + 1, 0:Wout, 0:Cin] = xe[:, 1]        # even cols, odd  rows
    xph_ref[0, 1, 0:Hout, 1:Wout + 1, 0:Cin] = xo[:, 0]        # odd  cols, even rows
    xph_ref[0, 0, 1:Hout + 1, 1:Wout + 1, 0:Cin] = xo[:, 1]    # odd  cols, odd  rows

    # 9 taps, each a contiguous slice + one lane-dense MXU dot, f32 accumulation.
    acc = jnp.zeros((Hout * Wout, Cop), jnp.float32)
    for dy in range(3):
        qy, py = dy // 2, dy % 2
        for dx in range(3):
            qx, px = dx // 2, dx % 2
            # patch[a, b, :] = xpad[2a + dy, 2b + dx, :]
            patch = xph_ref[px, py, qy:qy + Hout, qx:qx + Wout, :]
            patch = patch.reshape(Hout * Wout, Cp)
            acc += jnp.dot(patch, w_ref[dy * 3 + dx],
                           preferred_element_type=jnp.float32)

    y = acc + b_ref[...]                   # folded-BN bias, (Hout*Wout, Cop) + (1, Cop)
    y = jnp.where(y >= 0, y, 0.1 * y)      # LeakyReLU(0.1)
    o_ref[...] = y.reshape(1, Hout, Wout, Cop).astype(o_ref.dtype)


def _round_up(x, m):
    return (x + m - 1) // m * m


def fold_bn_and_pad_params(w_hwio, gamma, beta, running_mean, running_var,
                           eps=1e-5, lane=128, compute_dtype=jnp.float32):
    """Fold eval-mode BatchNorm into the conv weights; pad channels to the lane width.

    Returns:
      w9  : (9, Cin_p, Cout_p) tap-major BN-folded weights (compute_dtype)
      bias: (1, Cout_p)        BN-folded bias (float32)
    """
    K, K2, Cin, Cout = w_hwio.shape
    assert K == 3 and K2 == 3
    scale = gamma / jnp.sqrt(running_var + eps)           # (Cout,)
    bias = beta - running_mean * scale                    # (Cout,)
    w_f = w_hwio.astype(jnp.float32) * scale.reshape(1, 1, 1, Cout)
    Cin_p, Cout_p = _round_up(Cin, lane), _round_up(Cout, lane)
    w_p = jnp.zeros((K, K, Cin_p, Cout_p), jnp.float32)
    w_p = w_p.at[:, :, :Cin, :Cout].set(w_f)
    w9 = w_p.reshape(K * K, Cin_p, Cout_p).astype(compute_dtype)
    b_p = jnp.zeros((1, Cout_p), jnp.float32).at[0, :Cout].set(bias)
    return w9, b_p


def downsampling_layer(x_nchw, w9, bias_p, Cout, compute_dtype=jnp.float32):
    """Forward pass of DownsamplingLayer (eval mode). NCHW in, NCHW out."""
    N, Cin, H, W = x_nchw.shape
    assert H % 2 == 0 and W % 2 == 0, "stride-2 kernel assumes even H, W"
    Hout, Wout = H // 2, W // 2
    _, Cin_p, Cout_p = w9.shape

    # NCHW -> NHWC (channels on the 128-lane axis).
    x = jnp.transpose(x_nchw, (0, 2, 3, 1)).astype(compute_dtype)
    # W-axis even/odd phase split (layout plumbing): xs[n, px, r, j, c] = x[n, r, 2j+px, c]
    xs = jnp.transpose(x.reshape(N, H, Wout, 2, Cin), (0, 3, 1, 2, 4))

    kernel = functools.partial(_dsconv_kernel, H=H, W=W, Cin=Cin)
    out = pl.pallas_call(
        kernel,
        out_shape=jax.ShapeDtypeStruct((N, Hout, Wout, Cout_p), jnp.float32),
        grid=(N,),
        in_specs=[
            pl.BlockSpec((1, 2, H, Wout, Cin), lambda n: (n, 0, 0, 0, 0)),
            pl.BlockSpec((9, Cin_p, Cout_p), lambda n: (0, 0, 0)),
            pl.BlockSpec((1, Cout_p), lambda n: (0, 0)),
        ],
        out_specs=pl.BlockSpec((1, Hout, Wout, Cout_p), lambda n: (n, 0, 0, 0)),
        scratch_shapes=[
            pltpu.VMEM((2, 2, Hout + 1, Wout + 1, Cin_p), compute_dtype),
        ],
        compiler_params=pltpu.CompilerParams(
            dimension_semantics=("parallel",)),
    )(xs, w9, bias_p)

    # Drop lane padding, back to NCHW.
    return jnp.transpose(out[..., :Cout], (0, 3, 1, 2))


def downsampling_layer_ref(x_nchw, w_hwio, gamma, beta, running_mean, running_var,
                           eps=1e-5):
    """Pure-JAX reference (lax.conv) for correctness checking."""
    x = jnp.transpose(x_nchw, (0, 2, 3, 1)).astype(jnp.float32)
    y = lax.conv_general_dilated(
        x, w_hwio, window_strides=(2, 2), padding=[(1, 1), (1, 1)],
        dimension_numbers=("NHWC", "HWIO", "NHWC"))
    scale = gamma / jnp.sqrt(running_var + eps)
    bias = beta - running_mean * scale
    y = y * scale.reshape(1, 1, 1, -1) + bias.reshape(1, 1, 1, -1)
    y = jnp.where(y >= 0, y, 0.1 * y)
    return jnp.transpose(y, (0, 3, 1, 2))


if __name__ == "__main__":
    key = jax.random.PRNGKey(0)
    kx, kw, kg, kb, km, kv = jax.random.split(key, 6)

    N, Cin, Cout, H, W = 2, 16, 32, 16, 16
    x = jax.random.normal(kx, (N, Cin, H, W), jnp.float32)            # NCHW, like PyTorch
    w = 0.1 * jax.random.normal(kw, (3, 3, Cin, Cout), jnp.float32)   # HWIO
    gamma = 1.0 + 0.1 * jax.random.normal(kg, (Cout,), jnp.float32)
    beta = 0.1 * jax.random.normal(kb, (Cout,), jnp.float32)
    rmean = 0.05 * jax.random.normal(km, (Cout,), jnp.float32)
    rvar = 1.0 + 0.1 * jax.random.uniform(kv, (Cout,), jnp.float32)

    w9, bias_p = fold_bn_and_pad_params(w, gamma, beta, rmean, rvar)
    out = jax.block_until_ready(downsampling_layer(x, w9, bias_p, Cout))
    ref = jax.block_until_ready(
        downsampling_layer_ref(x, w, gamma, beta, rmean, rvar))

    assert out.shape == (N, Cout, H // 2, W // 2), out.shape
    max_err = float(jnp.max(jnp.abs(out - ref)))
    assert jnp.allclose(out, ref, rtol=1e-3, atol=1e-3), max_err
    print("KERNEL_OK")
</pallas_src>

<mosaic_0001>
module attributes {stable_mosaic.version = 11 : i64} {
  func.func @_dsconv_kernel(%arg0: i32, %arg1: memref<1x2x16x8x16xf32, #tpu.memory_space<vmem>>, %arg2: memref<9x128x128xf32, #tpu.memory_space<vmem>>, %arg3: memref<1x128xf32, #tpu.memory_space<vmem>>, %arg4: memref<1x8x8x128xf32, #tpu.memory_space<vmem>>, %arg5: memref<2x2x9x9x128xf32, #tpu.memory_space<vmem>>) attributes {dimension_semantics = [#tpu.dimension_semantics<parallel>], iteration_bounds = array<i64: 2>, scalar_prefetch = 0 : i64, scratch_operands = 1 : i64, tpu.core_type = #tpu.core_type<tc>, window_params = [{transform_indices = @transform_0, window_bounds = array<i64: 1, 2, 16, 8, 16>}, {pipeline_mode = #tpu.pipeline_mode<synchronous>, transform_indices = @transform_1, window_bounds = array<i64: 9, 128, 128>}, {pipeline_mode = #tpu.pipeline_mode<synchronous>, transform_indices = @transform_2, window_bounds = array<i64: 1, 128>}, {transform_indices = @transform_3, window_bounds = array<i64: 1, 8, 8, 128>}]} {
    %cst = arith.constant 0.000000e+00 : f32
    %0 = vector.broadcast %cst : f32 to vector<2x2x9x9x128xf32>
    %c0 = arith.constant 0 : index
    %c0_0 = arith.constant 0 : index
    %c0_1 = arith.constant 0 : index
    %c0_2 = arith.constant 0 : index
    %c0_3 = arith.constant 0 : index
    %1 = vector.load %arg5[%c0, %c0_0, %c0_1, %c0_2, %c0_3] : memref<2x2x9x9x128xf32, #tpu.memory_space<vmem>>, vector<2x2x9x9x128xf32>
    tpu.vector_store %arg5[%c0, %c0_0, %c0_1, %c0_2, %c0_3], %0 {strides = array<i32>} : memref<2x2x9x9x128xf32, #tpu.memory_space<vmem>>, vector<2x2x9x9x128xf32>,
    %c0_4 = arith.constant 0 : index
    %c0_5 = arith.constant 0 : index
    %c0_6 = arith.constant 0 : index
    %c0_7 = arith.constant 0 : index
    %c0_8 = arith.constant 0 : index
    %2 = vector.load %arg1[%c0_4, %c0_5, %c0_6, %c0_7, %c0_8] : memref<1x2x16x8x16xf32, #tpu.memory_space<vmem>>, vector<1x1x16x8x16xf32>
    %3 = vector.shape_cast %2 : vector<1x1x16x8x16xf32> to vector<16x8x16xf32>
    %4 = vector.shape_cast %3 : vector<16x8x16xf32> to vector<8x2x8x16xf32>
    %c0_9 = arith.constant 0 : index
    %c1 = arith.constant 1 : index
    %c0_10 = arith.constant 0 : index
    %c0_11 = arith.constant 0 : index
    %c0_12 = arith.constant 0 : index
    %5 = vector.load %arg1[%c0_9, %c1, %c0_10, %c0_11, %c0_12] : memref<1x2x16x8x16xf32, #tpu.memory_space<vmem>>, vector<1x1x16x8x16xf32>
    %6 = vector.shape_cast %5 : vector<1x1x16x8x16xf32> to vector<16x8x16xf32>
    %7 = vector.shape_cast %6 : vector<16x8x16xf32> to vector<8x2x8x16xf32>
    %8 = vector.extract_strided_slice %4 {offsets = [0, 0, 0, 0], sizes = [8, 1, 8, 16], strides = [1, 1, 1, 1]} : vector<8x2x8x16xf32> to vector<8x1x8x16xf32>
    %9 = vector.shape_cast %8 : vector<8x1x8x16xf32> to vector<8x8x16xf32>
    %c1_13 = arith.constant 1 : index
    %c1_14 = arith.constant 1 : index
    %c0_15 = arith.constant 0 : index
    %c0_16 = arith.constant 0 : index
    %c0_17 = arith.constant 0 : index
    %10 = vector.load %arg5[%c1_13, %c1_14, %c0_15, %c0_16, %c0_17] : memref<2x2x9x9x128xf32, #tpu.memory_space<vmem>>, vector<1x1x8x8x16xf32>
    %11 = vector.shape_cast %10 : vector<1x1x8x8x16xf32> to vector<8x8x16xf32>
    %12 = vector.shape_cast %9 : vector<8x8x16xf32> to vector<1x1x8x8x16xf32>
    tpu.vector_store %arg5[%c1_13, %c1_14, %c0_15, %c0_16, %c0_17], %12 {strides = array<i32>} : memref<2x2x9x9x128xf32, #tpu.memory_space<vmem>>, vector<1x1x8x8x16xf32>,
    %13 = vector.extract_strided_slice %4 {offsets = [0, 1, 0, 0], sizes = [8, 1, 8, 16], strides = [1, 1, 1, 1]} : vector<8x2x8x16xf32> to vector<8x1x8x16xf32>
    %14 = vector.shape_cast %13 : vector<8x1x8x16xf32> to vector<8x8x16xf32>
    %c1_18 = arith.constant 1 : index
    %c0_19 = arith.constant 0 : index
    %c1_20 = arith.constant 1 : index
    %c0_21 = arith.constant 0 : index
    %c0_22 = arith.constant 0 : index
    %15 = vector.load %arg5[%c1_18, %c0_19, %c1_20, %c0_21, %c0_22] : memref<2x2x9x9x128xf32, #tpu.memory_space<vmem>>, vector<1x1x8x8x16xf32>
    %16 = vector.shape_cast %15 : vector<1x1x8x8x16xf32> to vector<8x8x16xf32>
    %17 = vector.shape_cast %14 : vector<8x8x16xf32> to vector<1x1x8x8x16xf32>
    tpu.vector_store %arg5[%c1_18, %c0_19, %c1_20, %c0_21, %c0_22], %17 {strides = array<i32>} : memref<2x2x9x9x128xf32, #tpu.memory_space<vmem>>, vector<1x1x8x8x16xf32>,
    %18 = vector.extract_strided_slice %7 {offsets = [0, 0, 0, 0], sizes = [8, 1, 8, 16], strides = [1, 1, 1, 1]} : vector<8x2x8x16xf32> to vector<8x1x8x16xf32>
    %19 = vector.shape_cast %18 : vector<8x1x8x16xf32> to vector<8x8x16xf32>
    %c0_23 = arith.constant 0 : index
    %c1_24 = arith.constant 1 : index
    %c0_25 = arith.constant 0 : index
    %c1_26 = arith.constant 1 : index
    %c0_27 = arith.constant 0 : index
    %20 = vector.load %arg5[%c0_23, %c1_24, %c0_25, %c1_26, %c0_27] : memref<2x2x9x9x128xf32, #tpu.memory_space<vmem>>, vector<1x1x8x8x16xf32>
    %21 = vector.shape_cast %20 : vector<1x1x8x8x16xf32> to vector<8x8x16xf32>
    %22 = vector.shape_cast %19 : vector<8x8x16xf32> to vector<1x1x8x8x16xf32>
    tpu.vector_store %arg5[%c0_23, %c1_24, %c0_25, %c1_26, %c0_27], %22 {strides = array<i32>} : memref<2x2x9x9x128xf32, #tpu.memory_space<vmem>>, vector<1x1x8x8x16xf32>,
    %23 = vector.extract_strided_slice %7 {offsets = [0, 1, 0, 0], sizes = [8, 1, 8, 16], strides = [1, 1, 1, 1]} : vector<8x2x8x16xf32> to vector<8x1x8x16xf32>
    %24 = vector.shape_cast %23 : vector<8x1x8x16xf32> to vector<8x8x16xf32>
    %c0_28 = arith.constant 0 : index
    %c0_29 = arith.constant 0 : index
    %c1_30 = arith.constant 1 : index
    %c1_31 = arith.constant 1 : index
    %c0_32 = arith.constant 0 : index
    %25 = vector.load %arg5[%c0_28, %c0_29, %c1_30, %c1_31, %c0_32] : memref<2x2x9x9x128xf32, #tpu.memory_space<vmem>>, vector<1x1x8x8x16xf32>
    %26 = vector.shape_cast %25 : vector<1x1x8x8x16xf32> to vector<8x8x16xf32>
    %27 = vector.shape_cast %24 : vector<8x8x16xf32> to vector<1x1x8x8x16xf32>
    tpu.vector_store %arg5[%c0_28, %c0_29, %c1_30, %c1_31, %c0_32], %27 {strides = array<i32>} : memref<2x2x9x9x128xf32, #tpu.memory_space<vmem>>, vector<1x1x8x8x16xf32>,
    %cst_33 = arith.constant 0.000000e+00 : f32
    %28 = vector.broadcast %cst_33 : f32 to vector<64x128xf32>
    %c0_34 = arith.constant 0 : index
    %c0_35 = arith.constant 0 : index
    %c0_36 = arith.constant 0 : index
    %c0_37 = arith.constant 0 : index
    %c0_38 = arith.constant 0 : index
    %29 = vector.load %arg5[%c0_34, %c0_35, %c0_36, %c0_37, %c0_38] : memref<2x2x9x9x128xf32, #tpu.memory_space<vmem>>, vector<1x1x8x8x128xf32>
    %30 = vector.shape_cast %29 : vector<1x1x8x8x128xf32> to vector<8x8x128xf32>
    %31 = vector.shape_cast %30 : vector<8x8x128xf32> to vector<64x128xf32>
    %c0_39 = arith.constant 0 : index
    %c0_40 = arith.constant 0 : index
    %c0_41 = arith.constant 0 : index
    %32 = vector.load %arg2[%c0_39, %c0_40, %c0_41] : memref<9x128x128xf32, #tpu.memory_space<vmem>>, vector<1x128x128xf32>
    %33 = vector.shape_cast %32 : vector<1x128x128xf32> to vector<128x128xf32>
    %cst_42 = arith.constant dense<0.000000e+00> : vector<64x128xf32>
    %34 = tpu.matmul %31, %33, %cst_42 {dimension_numbers = #tpu.dot_dimension_numbers<[1], [0], [0], [1], [0, 0, 1, 1], [], []>} : vector<64x128xf32>, vector<128x128xf32>, vector<64x128xf32> -> vector<64x128xf32>
    %35 = arith.addf %28, %34 : vector<64x128xf32>
    %c1_43 = arith.constant 1 : index
    %c0_44 = arith.constant 0 : index
    %c0_45 = arith.constant 0 : index
    %c0_46 = arith.constant 0 : index
    %c0_47 = arith.constant 0 : index
    %36 = vector.load %arg5[%c1_43, %c0_44, %c0_45, %c0_46, %c0_47] : memref<2x2x9x9x128xf32, #tpu.memory_space<vmem>>, vector<1x1x8x8x128xf32>
    %37 = vector.shape_cast %36 : vector<1x1x8x8x128xf32> to vector<8x8x128xf32>
    %38 = vector.shape_cast %37 : vector<8x8x128xf32> to vector<64x128xf32>
    %c1_48 = arith.constant 1 : index
    %c0_49 = arith.constant 0 : index
    %c0_50 = arith.constant 0 : index
    %39 = vector.load %arg2[%c1_48, %c0_49, %c0_50] : memref<9x128x128xf32, #tpu.memory_space<vmem>>, vector<1x128x128xf32>
    %40 = vector.shape_cast %39 : vector<1x128x128xf32> to vector<128x128xf32>
    %cst_51 = arith.constant dense<0.000000e+00> : vector<64x128xf32>
    %41 = tpu.matmul %38, %40, %cst_51 {dimension_numbers = #tpu.dot_dimension_numbers<[1], [0], [0], [1], [0, 0, 1, 1], [], []>} : vector<64x128xf32>, vector<128x128xf32>, vector<64x128xf32> -> vector<64x128xf32>
    %42 = arith.addf %35, %41 : vector<64x128xf32>
    %c0_52 = arith.constant 0 : index
    %c0_53 = arith.constant 0 : index
    %c0_54 = arith.constant 0 : index
    %c1_55 = arith.constant 1 : index
    %c0_56 = arith.constant 0 : index
    %43 = vector.load %arg5[%c0_52, %c0_53, %c0_54, %c1_55, %c0_56] : memref<2x2x9x9x128xf32, #tpu.memory_space<vmem>>, vector<1x1x8x8x128xf32>
    %44 = vector.shape_cast %43 : vector<1x1x8x8x128xf32> to vector<8x8x128xf32>
    %45 = vector.shape_cast %44 : vector<8x8x128xf32> to vector<64x128xf32>
    %c2 = arith.constant 2 : index
    %c0_57 = arith.constant 0 : index
    %c0_58 = arith.constant 0 : index
    %46 = vector.load %arg2[%c2, %c0_57, %c0_58] : memref<9x128x128xf32, #tpu.memory_space<vmem>>, vector<1x128x128xf32>
    %47 = vector.shape_cast %46 : vector<1x128x128xf32> to vector<128x128xf32>
    %cst_59 = arith.constant dense<0.000000e+00> : vector<64x128xf32>
    %48 = tpu.matmul %45, %47, %cst_59 {dimension_numbers = #tpu.dot_dimension_numbers<[1], [0], [0], [1], [0, 0, 1, 1], [], []>} : vector<64x128xf32>, vector<128x128xf32>, vector<64x128xf32> -> vector<64x128xf32>
    %49 = arith.addf %42, %48 : vector<64x128xf32>
    %c0_60 = arith.constant 0 : index
    %c1_61 = arith.constant 1 : index
    %c0_62 = arith.constant 0 : index
    %c0_63 = arith.constant 0 : index
    %c0_64 = arith.constant 0 : index
    %50 = vector.load %arg5[%c0_60, %c1_61, %c0_62, %c0_63, %c0_64] : memref<2x2x9x9x128xf32, #tpu.memory_space<vmem>>, vector<1x1x8x8x128xf32>
    %51 = vector.shape_cast %50 : vector<1x1x8x8x128xf32> to vector<8x8x128xf32>
    %52 = vector.shape_cast %51 : vector<8x8x128xf32> to vector<64x128xf32>
    %c3 = arith.constant 3 : index
    %c0_65 = arith.constant 0 : index
    %c0_66 = arith.constant 0 : index
    %53 = vector.load %arg2[%c3, %c0_65, %c0_66] : memref<9x128x128xf32, #tpu.memory_space<vmem>>, vector<1x128x128xf32>
    %54 = vector.shape_cast %53 : vector<1x128x128xf32> to vector<128x128xf32>
    %cst_67 = arith.constant dense<0.000000e+00> : vector<64x128xf32>
    %55 = tpu.matmul %52, %54, %cst_67 {dimension_numbers = #tpu.dot_dimension_numbers<[1], [0], [0], [1], [0, 0, 1, 1], [], []>} : vector<64x128xf32>, vector<128x128xf32>, vector<64x128xf32> -> vector<64x128xf32>
    %56 = arith.addf %49, %55 : vector<64x128xf32>
    %c1_68 = arith.constant 1 : index
    %c1_69 = arith.constant 1 : index
    %c0_70 = arith.constant 0 : index
    %c0_71 = arith.constant 0 : index
    %c0_72 = arith.constant 0 : index
    %57 = vector.load %arg5[%c1_68, %c1_69, %c0_70, %c0_71, %c0_72] : memref<2x2x9x9x128xf32, #tpu.memory_space<vmem>>, vector<1x1x8x8x128xf32>
    %58 = vector.shape_cast %57 : vector<1x1x8x8x128xf32> to vector<8x8x128xf32>
    %59 = vector.shape_cast %58 : vector<8x8x128xf32> to vector<64x128xf32>
    %c4 = arith.constant 4 : index
    %c0_73 = arith.constant 0 : index
    %c0_74 = arith.constant 0 : index
    %60 = vector.load %arg2[%c4, %c0_73, %c0_74] : memref<9x128x128xf32, #tpu.memory_space<vmem>>, vector<1x128x128xf32>
    %61 = vector.shape_cast %60 : vector<1x128x128xf32> to vector<128x128xf32>
    %cst_75 = arith.constant dense<0.000000e+00> : vector<64x128xf32>
    %62 = tpu.matmul %59, %61, %cst_75 {dimension_numbers = #tpu.dot_dimension_numbers<[1], [0], [0], [1], [0, 0, 1, 1], [], []>} : vector<64x128xf32>, vector<128x128xf32>, vector<64x128xf32> -> vector<64x128xf32>
    %63 = arith.addf %56, %62 : vector<64x128xf32>
    %c0_76 = arith.constant 0 : index
    %c1_77 = arith.constant 1 : index
    %c0_78 = arith.constant 0 : index
    %c1_79 = arith.constant 1 : index
    %c0_80 = arith.constant 0 : index
    %64 = vector.load %arg5[%c0_76, %c1_77, %c0_78, %c1_79, %c0_80] : memref<2x2x9x9x128xf32, #tpu.memory_space<vmem>>, vector<1x1x8x8x128xf32>
    %65 = vector.shape_cast %64 : vector<1x1x8x8x128xf32> to vector<8x8x128xf32>
    %66 = vector.shape_cast %65 : vector<8x8x128xf32> to vector<64x128xf32>
    %c5 = arith.constant 5 : index
    %c0_81 = arith.constant 0 : index
    %c0_82 = arith.constant 0 : index
    %67 = vector.load %arg2[%c5, %c0_81, %c0_82] : memref<9x128x128xf32, #tpu.memory_space<vmem>>, vector<1x128x128xf32>
    %68 = vector.shape_cast %67 : vector<1x128x128xf32> to vector<128x128xf32>
    %cst_83 = arith.constant dense<0.000000e+00> : vector<64x128xf32>
    %69 = tpu.matmul %66, %68, %cst_83 {dimension_numbers = #tpu.dot_dimension_numbers<[1], [0], [0], [1], [0, 0, 1, 1], [], []>} : vector<64x128xf32>, vector<128x128xf32>, vector<64x128xf32> -> vector<64x128xf32>
    %70 = arith.addf %63, %69 : vector<64x128xf32>
    %c0_84 = arith.constant 0 : index
    %c0_85 = arith.constant 0 : index
    %c1_86 = arith.constant 1 : index
    %c0_87 = arith.constant 0 : index
    %c0_88 = arith.constant 0 : index
    %71 = vector.load %arg5[%c0_84, %c0_85, %c1_86, %c0_87, %c0_88] : memref<2x2x9x9x128xf32, #tpu.memory_space<vmem>>, vector<1x1x8x8x128xf32>
    %72 = vector.shape_cast %71 : vector<1x1x8x8x128xf32> to vector<8x8x128xf32>
    %73 = vector.shape_cast %72 : vector<8x8x128xf32> to vector<64x128xf32>
    %c6 = arith.constant 6 : index
    %c0_89 = arith.constant 0 : index
    %c0_90 = arith.constant 0 : index
    %74 = vector.load %arg2[%c6, %c0_89, %c0_90] : memref<9x128x128xf32, #tpu.memory_space<vmem>>, vector<1x128x128xf32>
    %75 = vector.shape_cast %74 : vector<1x128x128xf32> to vector<128x128xf32>
    %cst_91 = arith.constant dense<0.000000e+00> : vector<64x128xf32>
    %76 = tpu.matmul %73, %75, %cst_91 {dimension_numbers = #tpu.dot_dimension_numbers<[1], [0], [0], [1], [0, 0, 1, 1], [], []>} : vector<64x128xf32>, vector<128x128xf32>, vector<64x128xf32> -> vector<64x128xf32>
    %77 = arith.addf %70, %76 : vector<64x128xf32>
    %c1_92 = arith.constant 1 : index
    %c0_93 = arith.constant 0 : index
    %c1_94 = arith.constant 1 : index
    %c0_95 = arith.constant 0 : index
    %c0_96 = arith.constant 0 : index
    %78 = vector.load %arg5[%c1_92, %c0_93, %c1_94, %c0_95, %c0_96] : memref<2x2x9x9x128xf32, #tpu.memory_space<vmem>>, vector<1x1x8x8x128xf32>
    %79 = vector.shape_cast %78 : vector<1x1x8x8x128xf32> to vector<8x8x128xf32>
    %80 = vector.shape_cast %79 : vector<8x8x128xf32> to vector<64x128xf32>
    %c7 = arith.constant 7 : index
    %c0_97 = arith.constant 0 : index
    %c0_98 = arith.constant 0 : index
    %81 = vector.load %arg2[%c7, %c0_97, %c0_98] : memref<9x128x128xf32, #tpu.memory_space<vmem>>, vector<1x128x128xf32>
    %82 = vector.shape_cast %81 : vector<1x128x128xf32> to vector<128x128xf32>
    %cst_99 = arith.constant dense<0.000000e+00> : vector<64x128xf32>
    %83 = tpu.matmul %80, %82, %cst_99 {dimension_numbers = #tpu.dot_dimension_numbers<[1], [0], [0], [1], [0, 0, 1, 1], [], []>} : vector<64x128xf32>, vector<128x128xf32>, vector<64x128xf32> -> vector<64x128xf32>
    %84 = arith.addf %77, %83 : vector<64x128xf32>
    %c0_100 = arith.constant 0 : index
    %c0_101 = arith.constant 0 : index
    %c1_102 = arith.constant 1 : index
    %c1_103 = arith.constant 1 : index
    %c0_104 = arith.constant 0 : index
    %85 = vector.load %arg5[%c0_100, %c0_101, %c1_102, %c1_103, %c0_104] : memref<2x2x9x9x128xf32, #tpu.memory_space<vmem>>, vector<1x1x8x8x128xf32>
    %86 = vector.shape_cast %85 : vector<1x1x8x8x128xf32> to vector<8x8x128xf32>
    %87 = vector.shape_cast %86 : vector<8x8x128xf32> to vector<64x128xf32>
    %c8 = arith.constant 8 : index
    %c0_105 = arith.constant 0 : index
    %c0_106 = arith.constant 0 : index
    %88 = vector.load %arg2[%c8, %c0_105, %c0_106] : memref<9x128x128xf32, #tpu.memory_space<vmem>>, vector<1x128x128xf32>
    %89 = vector.shape_cast %88 : vector<1x128x128xf32> to vector<128x128xf32>
    %cst_107 = arith.constant dense<0.000000e+00> : vector<64x128xf32>
    %90 = tpu.matmul %87, %89, %cst_107 {dimension_numbers = #tpu.dot_dimension_numbers<[1], [0], [0], [1], [0, 0, 1, 1], [], []>} : vector<64x128xf32>, vector<128x128xf32>, vector<64x128xf32> -> vector<64x128xf32>
    %91 = arith.addf %84, %90 : vector<64x128xf32>
    %c0_108 = arith.constant 0 : index
    %c0_109 = arith.constant 0 : index
    %92 = vector.load %arg3[%c0_108, %c0_109] : memref<1x128xf32, #tpu.memory_space<vmem>>, vector<1x128xf32>
    %93 = vector.broadcast %92 : vector<1x128xf32> to vector<64x128xf32>
    %94 = arith.addf %91, %93 : vector<64x128xf32>
    %cst_110 = arith.constant 0.000000e+00 : f32
    %95 = vector.broadcast %cst_110 : f32 to vector<64x128xf32>
    %96 = arith.cmpf oge, %94, %95 : vector<64x128xf32>
    %cst_111 = arith.constant 1.000000e-01 : f32
    %97 = vector.broadcast %cst_111 : f32 to vector<64x128xf32>
    %98 = arith.mulf %97, %94 : vector<64x128xf32>
    %99 = arith.select %96, %94, %98 : vector<64x128xi1>, vector<64x128xf32>
    %100 = vector.shape_cast %99 : vector<64x128xf32> to vector<1x8x8x128xf32>
    %c0_112 = arith.constant 0 : index
    %c0_113 = arith.constant 0 : index
    %c0_114 = arith.constant 0 : index
    %c0_115 = arith.constant 0 : index
    %101 = vector.load %arg4[%c0_112, %c0_113, %c0_114, %c0_115] : memref<1x8x8x128xf32, #tpu.memory_space<vmem>>, vector<1x8x8x128xf32>
    tpu.vector_store %arg4[%c0_112, %c0_113, %c0_114, %c0_115], %100 {strides = array<i32>} : memref<1x8x8x128xf32, #tpu.memory_space<vmem>>, vector<1x8x8x128xf32>,
    return
  }
  func.func @transform_0(%arg0: i32) -> (i32, i32, i32, i32, i32) {
    %c0_i32 = arith.constant 0 : i32
    %c0_i32_0 = arith.constant 0 : i32
    %c0_i32_1 = arith.constant 0 : i32
    %c0_i32_2 = arith.constant 0 : i32
    %c0_i32_3 = arith.constant 0 : i32
    return %arg0, %c0_i32, %c0_i32_0, %c0_i32_1, %c0_i32_2 : i32, i32, i32, i32, i32
  }
  func.func @transform_1(%arg0: i32) -> (i32, i32, i32) {
    %c0_i32 = arith.constant 0 : i32
    %c0_i32_0 = arith.constant 0 : i32
    %c0_i32_1 = arith.constant 0 : i32
    %c0_i32_2 = arith.constant 0 : i32
    return %c0_i32, %c0_i32_0, %c0_i32_1 : i32, i32, i32
  }
  func.func @transform_2(%arg0: i32) -> (i32, i32) {
    %c0_i32 = arith.constant 0 : i32
    %c0_i32_0 = arith.constant 0 : i32
    %c0_i32_1 = arith.constant 0 : i32
    return %c0_i32, %c0_i32_0 : i32, i32
  }
  func.func @transform_3(%arg0: i32) -> (i32, i32, i32, i32) {
    %c0_i32 = arith.constant 0 : i32
    %c0_i32_0 = arith.constant 0 : i32
    %c0_i32_1 = arith.constant 0 : i32
    %c0_i32_2 = arith.constant 0 : i32
    return %arg0, %c0_i32, %c0_i32_0, %c0_i32_1 : i32, i32, i32, i32
  }
}

</mosaic_0001>

<llo_original>
// kernel: tpu_custom_call.1
$region0: #{tpu_custom_call.1}
  #allocation0 [shape = 'u32[]', space=smem, size = 0x4, offset = 0x4, fixed_abs, tag = 'smem constant byte address 0x4 - core index']
  #allocation1 [shape = 'u32[144,128]{1,0:T(1,128)}', space=vmem, size = 0x12000, scoped, tag = 'internal scratch']
  #allocation2 [shape = 'f32[2,2,9,9,128]{4,3,2,1,0:T(8,128)}', space=vmem, size = 0x48000, scoped, tag = 'scratch operand']
  %s0 = inlined_call_operand.hbm [shape: f32[2,2,16,8,16], index: 0, kind: input, shape index: {}]
  %s1 = inlined_call_operand.hbm [shape: f32[9,128,128], index: 1, kind: input, shape index: {}]
  %s2 = inlined_call_operand.vmem [shape: f32[1,128], index: 2, kind: input, shape index: {}]
  %s3 = inlined_call_operand.hbm [shape: f32[2,8,8,128], index: 3, kind: output, shape index: {}]
  %s4 = sld [smem:[#allocation0]]
  $region53: #{tpu_custom_call.1} parent=0
    _
  %s6 = ssub.s32 1, %s4
  %s7 = scalar_select 0, %s6, %s4
  $region1: #{tpu_custom_call.1} parent=0
    #allocation3 [shape = 'u8[262144]{0}', space=vmem, size = 0x40000, scoped, tag = 'input window, operand 0']
    #allocation4 [shape = 's32[2]{0}', space=sflag, size = 0x8, scoped, tag = 'scoped memory for tpu_custom_call.1']
    #allocation5 [shape = 's32[2]{0}', space=sflag, size = 0x8, scoped, tag = 'scoped memory for tpu_custom_call.1']
    #allocation6 [shape = 'u8[589824]{0}', space=vmem, size = 0x90000, scoped, tag = 'input window, operand 1, single buffered']
    #allocation7 [shape = 's32[1]{0}', space=sflag, size = 0x4, scoped, tag = 'scoped memory for tpu_custom_call.1']
    #allocation8 [shape = 'u8[65536]{0}', space=vmem, size = 0x10000, scoped, tag = 'output window, operand 0']
    %8 = vsyncpa [#allocation4], 0
    %s9 = scalar_lea.sflag [#allocation4], 1
    %10 = vsyncpa %s9, 0
    %11 = vsyncpa [#allocation7], 0
    %12 = vsyncpa [#allocation5], 0
    %s13 = scalar_lea.sflag [#allocation5], 1
    %14 = vsyncpa %s13, 0
    loop: start=0, step=1, limit=4
    $region2: #{tpu_custom_call.1} parent=1 // loop_pre_header
      _
    $region3: #{tpu_custom_call.1} parent=1 // loop_header
      %s16 = sphi 0, %s20
      %p17 = scmp.ge.s32.totalorder %s16, 4
      %s26 = sphi 0, %s28
      %s29 = sphi 0, %s26
      %s30 = sphi 0, %s29
      %s46 = sphi 0, %s30
      %s50 = sphi 0, %s50
      %s52 = sphi 0, %s50
      %s53 = sphi 0, %s52
      %s67 = sphi 0, %s53
      %s71 = sphi 0, %s71
      %s73 = sphi 0, %s71
      %s74 = sphi 0, %s73
      %s88 = sphi 0, %s74
      %s94 = sphi 0, %s96
      %s97 = sphi 0, %s94
      %s98 = sphi 0, %s97
      %s114 = sphi 0, %s98
    $region4: #{tpu_custom_call.1} parent=1 // loop_header_branch
      %19 = sbr.rel (%p17) target = $region8
    $region5: #{tpu_custom_call.1} parent=1 // loop_body
      %s21 = ssub.s32 %s16, 1
      %s22 = ssub.s32 %s16, 2
      %s23 = sadd.s32 %s16, 1
      %s24 = ssub.s32 %s16, %s23
      %p25 = scmp.eq.s32.totalorder %s24, 0
      %s27 = sadd.s32 %s26, 1
      %s28 = scalar_select %p25, %s26, %s27
      %p31 = pneg %p25
      %p32 = scmp.eq.s32.totalorder %s16, 1
      %p33 = por %p31, %p32
      %p34 = scmp.ne.s32.totalorder %s26, %s29
      %p35 = scmp.eq.s32.totalorder %s16, 0
      %p36 = por %p34, %p35
      %p37 = scmp.ne.s32.totalorder %s26, %s29
      %p38 = scmp.eq.s32.totalorder %s21, 1
      %p39 = por %p37, %p38
      %p40 = scmp.ne.s32.totalorder %s29, %s30
      %p41 = scmp.eq.s32.totalorder %s21, 0
      %p42 = por %p40, %p41
      %p43 = scmp.ne.s32.totalorder %s29, %s30
      %p44 = scmp.eq.s32.totalorder %s22, 1
      %p45 = por %p43, %p44
      %p47 = scmp.ne.s32.totalorder %s30, %s46
      %p48 = scmp.eq.s32.totalorder %s22, 0
      %p49 = por %p47, %p48
      %s51 = sadd.s32 %s50, 1
      %p54 = scmp.eq.s32.totalorder %s16, 1
      %p55 = scmp.ne.s32.totalorder %s50, %s52
      %p56 = scmp.eq.s32.totalorder %s16, 0
      %p57 = por %p55, %p56
      %p58 = scmp.ne.s32.totalorder %s50, %s52
      %p59 = scmp.eq.s32.totalorder %s21, 1
      %p60 = por %p58, %p59
      %p61 = scmp.ne.s32.totalorder %s52, %s53
      %p62 = scmp.eq.s32.totalorder %s21, 0
      %p63 = por %p61, %p62
      %p64 = scmp.ne.s32.totalorder %s52, %s53
      %p65 = scmp.eq.s32.totalorder %s22, 1
      %p66 = por %p64, %p65
      %p68 = scmp.ne.s32.totalorder %s53, %s67
      %p69 = scmp.eq.s32.totalorder %s22, 0
      %p70 = por %p68, %p69
      %s72 = sadd.s32 %s71, 1
      %p75 = scmp.eq.s32.totalorder %s16, 1
      %p76 = scmp.ne.s32.totalorder %s71, %s73
      %p77 = scmp.eq.s32.totalorder %s16, 0
      %p78 = por %p76, %p77
      %p79 = scmp.ne.s32.totalorder %s71, %s73
      %p80 = scmp.eq.s32.totalorder %s21, 1
      %p81 = por %p79, %p80
      %p82 = scmp.ne.s32.totalorder %s73, %s74
      %p83 = scmp.eq.s32.totalorder %s21, 0
      %p84 = por %p82, %p83
      %p85 = scmp.ne.s32.totalorder %s73, %s74
      %p86 = scmp.eq.s32.totalorder %s22, 1
      %p87 = por %p85, %p86
      %p89 = scmp.ne.s32.totalorder %s74, %s88
      %p90 = scmp.eq.s32.totalorder %s22, 0
      %p91 = por %p89, %p90
      %s92 = ssub.s32 %s16, %s23
      %p93 = scmp.eq.s32.totalorder %s92, 0
      %s95 = sadd.s32 %s94, 1
      %s96 = scalar_select %p93, %s94, %s95
      %p99 = pneg %p93
      %p100 = scmp.eq.s32.totalorder %s16, 1
      %p101 = por %p99, %p100
      %p102 = scmp.ne.s32.totalorder %s94, %s97
      %p103 = scmp.eq.s32.totalorder %s16, 0
      %p104 = por %p102, %p103
      %p105 = scmp.ne.s32.totalorder %s94, %s97
      %p106 = scmp.eq.s32.totalorder %s21, 1
      %p107 = por %p105, %p106
      %p108 = scmp.ne.s32.totalorder %s97, %s98
      %p109 = scmp.eq.s32.totalorder %s21, 0
      %p110 = por %p108, %p109
      %p111 = scmp.ne.s32.totalorder %s97, %s98
      %p112 = scmp.eq.s32.totalorder %s22, 1
      %p113 = por %p111, %p112
      %p115 = scmp.ne.s32.totalorder %s98, %s114
      %p116 = scmp.eq.s32.totalorder %s22, 0
      %p117 = por %p115, %p116
      %p118 = scmp.le.s32.totalorder 1, %s16
      %p119 = scmp.lt.s32.totalorder %s16, 3
      %p120 = pnand %p118, %p119
      %p121 = pneg %p120
      // Predicated region
      $region9: #{tpu_custom_call.1} parent=5 // pred_check
        _
      $region10: #{tpu_custom_call.1} parent=5 // pred_check_branch
        %123 = sbr.rel (%p120) target = $region12
      $region11: #{tpu_custom_call.1} parent=5 // pred_region
        %s124 = ssub.s32 %s16, 1
        // Predicated region
        $region13: #{tpu_custom_call.1} parent=11 // pred_check
          %p125 = pneg %p63
        $region14: #{tpu_custom_call.1} parent=11 // pred_check_branch
          %127 = sbr.rel (%p125) target = $region16
        $region15: #{tpu_custom_call.1} parent=11 // pred_region
          %s129 = ssub.s32 18432, 18432
          %130 = vsyncadd [#allocation7], %s129
          %s131 = sshll.u32 [#allocation6], 4
          %s132 = int_to_ptr.vmem [resolvable:$true] %s131
          %137 = dma.hbm_to_vmem [thread:$0]  %s1, 18432, %s132, [#allocation7], 128, 128, 8
        $region16: #{tpu_custom_call.1} parent=11 // pred_fallthru
          _
        // Predicated region
        $region17: #{tpu_custom_call.1} parent=11 // pred_check
          %p138 = pneg %p84
        $region18: #{tpu_custom_call.1} parent=11 // pred_check_branch
          %140 = sbr.rel (%p138) target = $region20
        $region19: #{tpu_custom_call.1} parent=11 // pred_region
          _
        $region20: #{tpu_custom_call.1} parent=11 // pred_fallthru
          _
      $region12: #{tpu_custom_call.1} parent=5 // pred_fallthru
        _
      %p141 = scmp.lt.s32.totalorder %s16, 2
      // Predicated region
      $region21: #{tpu_custom_call.1} parent=5 // pred_check
        %p142 = pneg %p141
      $region22: #{tpu_custom_call.1} parent=5 // pred_check_branch
        %144 = sbr.rel (%p142) target = $region24
      $region23: #{tpu_custom_call.1} parent=5 // pred_region
        // Predicated region
        $region25: #{tpu_custom_call.1} parent=23 // pred_check
          %p145 = pneg %p36
        $region26: #{tpu_custom_call.1} parent=23 // pred_check_branch
          %147 = sbr.rel (%p145) target = $region28
        $region27: #{tpu_custom_call.1} parent=23 // pred_region
          %s148 = sand.u32 %s26, 1
          %s149 = scalar_lea.sflag [#allocation4], %s148
          %s150 = sand.u32 %s26, 1
          %s151 = smul.addr %s150, 256
          %s152 = scalar_lea.vmem [#allocation3], %s151
          %s154 = ssub.s32 4096, 4096
          %155 = vsyncadd %s149, %s154
          %s156 = smul.addr %s16, 32
          %s157 = smul.addr %s156, 128
          %s158 = scalar_lea.hbm %s0, %s157
          %s159 = sshll.u32 %s152, 4
          %s160 = int_to_ptr.vmem [resolvable:$true] %s159
          %165 = dma.hbm_to_vmem [thread:$0]  %s158, 4096, %s160, %s149, 128, 128, 8
        $region28: #{tpu_custom_call.1} parent=23 // pred_fallthru
          _
      $region24: #{tpu_custom_call.1} parent=5 // pred_fallthru
        _
      %p166 = scmp.le.s32.totalorder 1, %s16
      %p167 = scmp.lt.s32.totalorder %s16, 3
      %p168 = pnand %p166, %p167
      %p169 = pneg %p168
      // Predicated region
      $region29: #{tpu_custom_call.1} parent=5 // pred_check
        _
      $region30: #{tpu_custom_call.1} parent=5 // pred_check_branch
        %171 = sbr.rel (%p168) target = $region32
      $region31: #{tpu_custom_call.1} parent=5 // pred_region
        %s172 = ssub.s32 %s16, 1
        %s173 = sand.u32 %s29, 1
        %s174 = scalar_lea.sflag [#allocation4], %s173
        %s175 = sand.u32 %s29, 1
        %s176 = smul.addr %s175, 256
        %s177 = scalar_lea.vmem [#allocation3], %s176
        // Predicated region
        $region33: #{tpu_custom_call.1} parent=31 // pred_check
          %p178 = pneg %p42
        $region34: #{tpu_custom_call.1} parent=31 // pred_check_branch
          %180 = sbr.rel (%p178) target = $region36
        $region35: #{tpu_custom_call.1} parent=31 // pred_region
          %181 = dma.done %s174, 4096
        $region36: #{tpu_custom_call.1} parent=31 // pred_fallthru
          _
        // Predicated region
        $region37: #{tpu_custom_call.1} parent=31 // pred_check
          %p182 = pneg %p63
        $region38: #{tpu_custom_call.1} parent=31 // pred_check_branch
          %184 = sbr.rel (%p182) target = $region40
        $region39: #{tpu_custom_call.1} parent=31 // pred_region
          %185 = dma.done [#allocation7], 18432
        $region40: #{tpu_custom_call.1} parent=31 // pred_fallthru
          _
        %s186 = sand.u32 %s29, 1
        %s187 = scalar_lea.sflag [#allocation4], %s186
        %s188 = sand.u32 %s29, 1
        %s189 = smul.addr %s188, 256
        %s190 = scalar_lea.vmem [#allocation3], %s189
        %p191 = pneg %p42
        %p192 = pneg %p39
        %p193 = pneg %p63
        %p194 = pneg %p60
        %p195 = pneg %p84
        %p196 = pneg %p81
        %p197 = pneg %p110
        %p198 = pneg %p107
        %s199 = sand.u32 %s97, 1
        %s200 = scalar_lea.sflag [#allocation5], %s199
        %s201 = sand.u32 %s97, 1
        %s202 = smul.addr %s201, 64
        %s203 = scalar_lea.vmem [#allocation8], %s202
        %204 = vst [vmem:[#allocation2] sm:$0xff] 0.0
        %205 = vst [vmem:[#allocation2 + $0x8] sm:$0x1] 0.0
        %206 = vst [vmem:[#allocation2 + $0x10] sm:$0xff] 0.0
        %207 = vst [vmem:[#allocation2 + $0x18] sm:$0x1] 0.0
        %208 = vst [vmem:[#allocation2 + $0x20] sm:$0xff] 0.0
        %209 = vst [vmem:[#allocation2 + $0x28] sm:$0x1] 0.0
        %210 = vst [vmem:[#allocation2 + $0x30] sm:$0xff] 0.0
        %211 = vst [vmem:[#allocation2 + $0x38] sm:$0x1] 0.0
        %212 = vst [vmem:[#allocation2 + $0x40] sm:$0xff] 0.0
        %213 = vst [vmem:[#allocation2 + $0x48] sm:$0x1] 0.0
        %214 = vst [vmem:[#allocation2 + $0x50] sm:$0xff] 0.0
        %215 = vst [vmem:[#allocation2 + $0x58] sm:$0x1] 0.0
        %216 = vst [vmem:[#allocation2 + $0x60] sm:$0xff] 0.0
        %217 = vst [vmem:[#allocation2 + $0x68] sm:$0x1] 0.0
        %218 = vst [vmem:[#allocation2 + $0x70] sm:$0xff] 0.0
        %219 = vst [vmem:[#allocation2 + $0x78] sm:$0x1] 0.0
        %220 = vst [vmem:[#allocation2 + $0x80] sm:$0xff] 0.0
        %221 = vst [vmem:[#allocation2 + $0x88] sm:$0x1] 0.0
        %222 = vst [vmem:[#allocation2 + $0x90] sm:$0xff] 0.0
        %223 = vst [vmem:[#allocation2 + $0x98] sm:$0x1] 0.0
        %224 = vst [vmem:[#allocation2 + $0xa0] sm:$0xff] 0.0
        %225 = vst [vmem:[#allocation2 + $0xa8] sm:$0x1] 0.0
        %226 = vst [vmem:[#allocation2 + $0xb0] sm:$0xff] 0.0
        %227 = vst [vmem:[#allocation2 + $0xb8] sm:$0x1] 0.0
        %228 = vst [vmem:[#allocation2 + $0xc0] sm:$0xff] 0.0
        %229 = vst [vmem:[#allocation2 + $0xc8] sm:$0x1] 0.0
        %230 = vst [vmem:[#allocation2 + $0xd0] sm:$0xff] 0.0
        %231 = vst [vmem:[#allocation2 + $0xd8] sm:$0x1] 0.0
        %232 = vst [vmem:[#allocation2 + $0xe0] sm:$0xff] 0.0
        %233 = vst [vmem:[#allocation2 + $0xe8] sm:$0x1] 0.0
        %234 = vst [vmem:[#allocation2 + $0xf0] sm:$0xff] 0.0
        %235 = vst [vmem:[#allocation2 + $0xf8] sm:$0x1] 0.0
        %236 = vst [vmem:[#allocation2 + $0x100] sm:$0xff] 0.0
        %237 = vst [vmem:[#allocation2 + $0x108] sm:$0x1] 0.0
        %238 = vst [vmem:[#allocation2 + $0x110] sm:$0xff] 0.0
        %239 = vst [vmem:[#allocation2 + $0x118] sm:$0x1] 0.0
        %240 = vst [vmem:[#allocation2 + $0x120] sm:$0xff] 0.0
        %241 = vst [vmem:[#allocation2 + $0x128] sm:$0x1] 0.0
        %242 = vst [vmem:[#allocation2 + $0x130] sm:$0xff] 0.0
        %243 = vst [vmem:[#allocation2 + $0x138] sm:$0x1] 0.0
        %244 = vst [vmem:[#allocation2 + $0x140] sm:$0xff] 0.0
        %245 = vst [vmem:[#allocation2 + $0x148] sm:$0x1] 0.0
        %246 = vst [vmem:[#allocation2 + $0x150] sm:$0xff] 0.0
        %247 = vst [vmem:[#allocation2 + $0x158] sm:$0x1] 0.0
        %248 = vst [vmem:[#allocation2 + $0x160] sm:$0xff] 0.0
        %249 = vst [vmem:[#allocation2 + $0x168] sm:$0x1] 0.0
        %250 = vst [vmem:[#allocation2 + $0x170] sm:$0xff] 0.0
        %251 = vst [vmem:[#allocation2 + $0x178] sm:$0x1] 0.0
        %252 = vst [vmem:[#allocation2 + $0x180] sm:$0xff] 0.0
        %253 = vst [vmem:[#allocation2 + $0x188] sm:$0x1] 0.0
        %254 = vst [vmem:[#allocation2 + $0x190] sm:$0xff] 0.0
        %255 = vst [vmem:[#allocation2 + $0x198] sm:$0x1] 0.0
        %256 = vst [vmem:[#allocation2 + $0x1a0] sm:$0xff] 0.0
        %257 = vst [vmem:[#allocation2 + $0x1a8] sm:$0x1] 0.0
        %258 = vst [vmem:[#allocation2 + $0x1b0] sm:$0xff] 0.0
        %259 = vst [vmem:[#allocation2 + $0x1b8] sm:$0x1] 0.0
        %260 = vst [vmem:[#allocation2 + $0x1c0] sm:$0xff] 0.0
        %261 = vst [vmem:[#allocation2 + $0x1c8] sm:$0x1] 0.0
        %262 = vst [vmem:[#allocation2 + $0x1d0] sm:$0xff] 0.0
        %263 = vst [vmem:[#allocation2 + $0x1d8] sm:$0x1] 0.0
        %264 = vst [vmem:[#allocation2 + $0x1e0] sm:$0xff] 0.0
        %265 = vst [vmem:[#allocation2 + $0x1e8] sm:$0x1] 0.0
        %266 = vst [vmem:[#allocation2 + $0x1f0] sm:$0xff] 0.0
        %267 = vst [vmem:[#allocation2 + $0x1f8] sm:$0x1] 0.0
        %268 = vst [vmem:[#allocation2 + $0x200] sm:$0xff] 0.0
        %269 = vst [vmem:[#allocation2 + $0x208] sm:$0x1] 0.0
        %270 = vst [vmem:[#allocation2 + $0x210] sm:$0xff] 0.0
        %271 = vst [vmem:[#allocation2 + $0x218] sm:$0x1] 0.0
        %272 = vst [vmem:[#allocation2 + $0x220] sm:$0xff] 0.0
        %273 = vst [vmem:[#allocation2 + $0x228] sm:$0x1] 0.0
        %274 = vst [vmem:[#allocation2 + $0x230] sm:$0xff] 0.0
        %275 = vst [vmem:[#allocation2 + $0x238] sm:$0x1] 0.0
        %v276 = vld [vmem:[%s177] sm:$0xff]
        %v277 = vld [vmem:[%s177 + $0x8] sm:$0xff]
        %v278 = vld [vmem:[%s177 + $0x10] sm:$0xff]
        %v279 = vld [vmem:[%s177 + $0x18] sm:$0xff]
        %v280 = vld [vmem:[%s177 + $0x20] sm:$0xff]
        %v281 = vld [vmem:[%s177 + $0x28] sm:$0xff]
        %v282 = vld [vmem:[%s177 + $0x30] sm:$0xff]
        %v283 = vld [vmem:[%s177 + $0x38] sm:$0xff]
        %v284 = vld [vmem:[%s177 + $0x40] sm:$0xff]
        %v285 = vld [vmem:[%s177 + $0x48] sm:$0xff]
        %v286 = vld [vmem:[%s177 + $0x50] sm:$0xff]
        %v287 = vld [vmem:[%s177 + $0x58] sm:$0xff]
        %v288 = vld [vmem:[%s177 + $0x60] sm:$0xff]
        %v289 = vld [vmem:[%s177 + $0x68] sm:$0xff]
        %v290 = vld [vmem:[%s177 + $0x70] sm:$0xff]
        %v291 = vld [vmem:[%s177 + $0x78] sm:$0xff]
        %s292 = scalar_lea.vmem %s177, 128 [#allocation3]
        %v293 = vld [vmem:[%s292] sm:$0xff]
        %v294 = vld [vmem:[%s292 + $0x8] sm:$0xff]
        %v295 = vld [vmem:[%s292 + $0x10] sm:$0xff]
        %v296 = vld [vmem:[%s292 + $0x18] sm:$0xff]
        %v297 = vld [vmem:[%s292 + $0x20] sm:$0xff]
        %v298 = vld [vmem:[%s292 + $0x28] sm:$0xff]
        %v299 = vld [vmem:[%s292 + $0x30] sm:$0xff]
        %v300 = vld [vmem:[%s292 + $0x38] sm:$0xff]
        %v301 = vld [vmem:[%s292 + $0x40] sm:$0xff]
        %v302 = vld [vmem:[%s292 + $0x48] sm:$0xff]
        %v303 = vld [vmem:[%s292 + $0x50] sm:$0xff]
        %v304 = vld [vmem:[%s292 + $0x58] sm:$0xff]
        %v305 = vld [vmem:[%s292 + $0x60] sm:$0xff]
        %v306 = vld [vmem:[%s292 + $0x68] sm:$0xff]
        %v307 = vld [vmem:[%s292 + $0x70] sm:$0xff]
        %v308 = vld [vmem:[%s292 + $0x78] sm:$0xff]
        %s309 = scalar_lea.vmem [#allocation2], 432
        %vm310 = vcmask 130048
        %311 = vst.msk [vmem:[%s309] sm:$0xff] %vm310, %v276
        %312 = vst.msk [vmem:[%s309 + $0x10] sm:$0xff] %vm310, %v278
        %313 = vst.msk [vmem:[%s309 + $0x20] sm:$0xff] %vm310, %v280
        %314 = vst.msk [vmem:[%s309 + $0x30] sm:$0xff] %vm310, %v282
        %315 = vst.msk [vmem:[%s309 + $0x40] sm:$0xff] %vm310, %v284
        %316 = vst.msk [vmem:[%s309 + $0x50] sm:$0xff] %vm310, %v286
        %317 = vst.msk [vmem:[%s309 + $0x60] sm:$0xff] %vm310, %v288
        %318 = vst.msk [vmem:[%s309 + $0x70] sm:$0xff] %vm310, %v290
        %s319 = scalar_lea.vmem [#allocation2], 304
        %320 = vst.msk [vmem:[%s319] sm:$0xff] %vm310, %v277
        %321 = vst.msk [vmem:[%s319 + $0x10] sm:$0xff] %vm310, %v279
        %322 = vst.msk [vmem:[%s319 + $0x20] sm:$0xff] %vm310, %v281
        %323 = vst.msk [vmem:[%s319 + $0x30] sm:$0xff] %vm310, %v283
        %324 = vst.msk [vmem:[%s319 + $0x40] sm:$0xff] %vm310, %v285
        %325 = vst.msk [vmem:[%s319 + $0x50] sm:$0xff] %vm310, %v287
        %326 = vst.msk [vmem:[%s319 + $0x60] sm:$0xff] %vm310, %v289
        %327 = vst.msk [vmem:[%s319 + $0x70] sm:$0xff] %vm310, %v291
        %s328 = scalar_lea.vmem [#allocation2], 144
        %329 = vst.msk [vmem:[%s328 + $0x1] sm:$0xff] %vm310, %v293
        %330 = vst.msk [vmem:[%s328 + $0x11] sm:$0xff] %vm310, %v295
        %331 = vst.msk [vmem:[%s328 + $0x21] sm:$0xff] %vm310, %v297
        %332 = vst.msk [vmem:[%s328 + $0x31] sm:$0xff] %vm310, %v299
        %333 = vst.msk [vmem:[%s328 + $0x41] sm:$0xff] %vm310, %v301
        %334 = vst.msk [vmem:[%s328 + $0x51] sm:$0xff] %vm310, %v303
        %335 = vst.msk [vmem:[%s328 + $0x61] sm:$0xff] %vm310, %v305
        %336 = vst.msk [vmem:[%s328 + $0x71] sm:$0xff] %vm310, %v307
        %s337 = scalar_lea.vmem [#allocation2], 16
        %338 = vst.msk [vmem:[%s337 + $0x1] sm:$0xff] %vm310, %v294
        %339 = vst.msk [vmem:[%s337 + $0x11] sm:$0xff] %vm310, %v296
        %340 = vst.msk [vmem:[%s337 + $0x21] sm:$0xff] %vm310, %v298
        %341 = vst.msk [vmem:[%s337 + $0x31] sm:$0xff] %vm310, %v300
        %342 = vst.msk [vmem:[%s337 + $0x41] sm:$0xff] %vm310, %v302
        %343 = vst.msk [vmem:[%s337 + $0x51] sm:$0xff] %vm310, %v304
        %344 = vst.msk [vmem:[%s337 + $0x61] sm:$0xff] %vm310, %v306
        %345 = vst.msk [vmem:[%s337 + $0x71] sm:$0xff] %vm310, %v308
        %v346 = vld [vmem:[#allocation2] sm:$0xff]
        %v347 = vld [vmem:[#allocation2 + $0x10] sm:$0xff]
        %v348 = vld [vmem:[#allocation2 + $0x20] sm:$0xff]
        %v349 = vld [vmem:[#allocation2 + $0x30] sm:$0xff]
        %v350 = vld [vmem:[#allocation2 + $0x40] sm:$0xff]
        %v351 = vld [vmem:[#allocation2 + $0x50] sm:$0xff]
        %v352 = vld [vmem:[#allocation2 + $0x60] sm:$0xff]
        %v353 = vld [vmem:[#allocation2 + $0x70] sm:$0xff]
        %v354 = vld [vmem:[#allocation6] sm:$0xff]
        %v355 = vld [vmem:[#allocation6 + $0x8] sm:$0xff]
        %v356 = vld [vmem:[#allocation6 + $0x10] sm:$0xff]
        %v357 = vld [vmem:[#allocation6 + $0x18] sm:$0xff]
        %v358 = vld [vmem:[#allocation6 + $0x20] sm:$0xff]
        %v359 = vld [vmem:[#allocation6 + $0x28] sm:$0xff]
        %v360 = vld [vmem:[#allocation6 + $0x30] sm:$0xff]
        %v361 = vld [vmem:[#allocation6 + $0x38] sm:$0xff]
        %v362 = vld [vmem:[#allocation6 + $0x40] sm:$0xff]
        %v363 = vld [vmem:[#allocation6 + $0x48] sm:$0xff]
        %v364 = vld [vmem:[#allocation6 + $0x50] sm:$0xff]
        %v365 = vld [vmem:[#allocation6 + $0x58] sm:$0xff]
        %v366 = vld [vmem:[#allocation6 + $0x60] sm:$0xff]
        %v367 = vld [vmem:[#allocation6 + $0x68] sm:$0xff]
        %v368 = vld [vmem:[#allocation6 + $0x70] sm:$0xff]
        %v369 = vld [vmem:[#allocation6 + $0x78] sm:$0xff]
        %s370 = scalar_lea.vmem [#allocation2], 288
        %v371 = vld [vmem:[%s370] sm:$0xff]
        %v372 = vld [vmem:[%s370 + $0x10] sm:$0xff]
        %v373 = vld [vmem:[%s370 + $0x20] sm:$0xff]
        %v374 = vld [vmem:[%s370 + $0x30] sm:$0xff]
        %v375 = vld [vmem:[%s370 + $0x40] sm:$0xff]
        %v376 = vld [vmem:[%s370 + $0x50] sm:$0xff]
        %v377 = vld [vmem:[%s370 + $0x60] sm:$0xff]
        %v378 = vld [vmem:[%s370 + $0x70] sm:$0xff]
        %s379 = scalar_lea.vmem [#allocation6], 128
        %v380 = vld [vmem:[%s379] sm:$0xff]
        %v381 = vld [vmem:[%s379 + $0x8] sm:$0xff]
        %v382 = vld [vmem:[%s379 + $0x10] sm:$0xff]
        %v383 = vld [vmem:[%s379 + $0x18] sm:$0xff]
        %v384 = vld [vmem:[%s379 + $0x20] sm:$0xff]
        %v385 = vld [vmem:[%s379 + $0x28] sm:$0xff]
        %v386 = vld [vmem:[%s379 + $0x30] sm:$0xff]
        %v387 = vld [vmem:[%s379 + $0x38] sm:$0xff]
        %v388 = vld [vmem:[%s379 + $0x40] sm:$0xff]
        %v389 = vld [vmem:[%s379 + $0x48] sm:$0xff]
        %v390 = vld [vmem:[%s379 + $0x50] sm:$0xff]
        %v391 = vld [vmem:[%s379 + $0x58] sm:$0xff]
        %v392 = vld [vmem:[%s379 + $0x60] sm:$0xff]
        %v393 = vld [vmem:[%s379 + $0x68] sm:$0xff]
        %v394 = vld [vmem:[%s379 + $0x70] sm:$0xff]
        %v395 = vld [vmem:[%s379 + $0x78] sm:$0xff]
        %396 = vmatprep.subr.mxu0 0.0
        %397 = vmatpush1.msra.mxu0 %v395
        %398 = vmatprep.subr.mxu0 0.0
        %399 = vmatpush1.msra.mxu0 %v394
        %400 = vmatprep.subr.mxu0 0.0
        %401 = vmatpush1.msra.mxu0 %v393
        %402 = vmatprep.subr.mxu0 0.0
        %403 = vmatpush1.msra.mxu0 %v392
        %404 = vmatprep.subr.mxu0 0.0
        %405 = vmatpush1.msra.mxu0 %v391
        %406 = vmatprep.subr.mxu0 0.0
        %407 = vmatpush1.msra.mxu0 %v390
        %408 = vmatprep.subr.mxu0 0.0
        %409 = vmatpush1.msra.mxu0 %v389
        %410 = vmatprep.subr.mxu0 0.0
        %411 = vmatpush1.msra.mxu0 %v388
        %412 = vmatprep.subr.mxu0 0.0
        %413 = vmatpush1.msra.mxu0 %v387
        %414 = vmatprep.subr.mxu0 0.0
        %415 = vmatpush1.msra.mxu0 %v386
        %416 = vmatprep.subr.mxu0 0.0
        %417 = vmatpush1.msra.mxu0 %v385
        %418 = vmatprep.subr.mxu0 0.0
        %419 = vmatpush1.msra.mxu0 %v384
        %420 = vmatprep.subr.mxu0 0.0
        %421 = vmatpush1.msra.mxu0 %v383
        %422 = vmatprep.subr.mxu0 0.0
        %423 = vmatpush1.msra.mxu0 %v382
        %424 = vmatprep.subr.mxu0 0.0
        %425 = vmatpush1.msra.mxu0 %v381
        %426 = vmatprep.subr.mxu0 0.0
        %427 = vmatpush1.msra.mxu0 %v380
        %428 = vmatprep.subr.mxu0 0.0
        %429 = vmatpush2.msra.mxu0 0.0
        %430 = vmatprep.subr.mxu0 0.0
        %431 = vmatpush2.msra.mxu0 0.0
        %432 = vmatprep.subr.mxu0 0.0
        %433 = vmatpush2.msra.mxu0 0.0
        %434 = vmatprep.subr.mxu0 0.0
        %435 = vmatpush2.msra.mxu0 0.0
        %436 = vmatprep.subr.mxu0 0.0
        %437 = vmatpush2.msra.mxu0 0.0
        %438 = vmatprep.subr.mxu0 0.0
        %439 = vmatpush2.msra.mxu0 0.0
        %440 = vmatprep.subr.mxu0 0.0
        %441 = vmatpush2.msra.mxu0 0.0
        %442 = vmatprep.subr.mxu0 0.0
        %443 = vmatpush2.msra.mxu0 0.0
        %444 = vmatprep.subr.mxu0 0.0
        %445 = vmatpush2.msra.mxu0 0.0
        %446 = vmatprep.subr.mxu0 0.0
        %447 = vmatpush2.msra.mxu0 0.0
        %448 = vmatprep.subr.mxu0 0.0
        %449 = vmatpush2.msra.mxu0 0.0
        %450 = vmatprep.subr.mxu0 0.0
        %451 = vmatpush2.msra.mxu0 0.0
        %452 = vmatprep.subr.mxu0 0.0
        %453 = vmatpush2.msra.mxu0 0.0
        %454 = vmatprep.subr.mxu0 0.0
        %455 = vmatpush2.msra.mxu0 0.0
        %456 = vmatprep.subr.mxu0 0.0
        %457 = vmatpush2.msra.mxu0 0.0
        %458 = vmatprep.subr.mxu0 0.0
        %459 = vmatpush2.msra.mxu0 0.0
        %460 = vmatprep.mubr.f32.mxu0 0.0
        %461 = vmatmul.mubr.f32.gmra.mxu0 %v371
        %v462 = vpop.f32.mrf.mxu0
        %v463 = vadd.f32 0.0, %v462
        %v464 = vpop.f32.mrf.mxu0
        %465 = vmatprep.mubr.f32.mxu0 0.0
        %466 = vmatmul.mubr.f32.gmra.mxu0 %v372
        %v467 = vpop.f32.mrf.mxu0
        %v468 = vadd.f32 0.0, %v467
        %v469 = vpop.f32.mrf.mxu0
        %470 = vmatprep.mubr.f32.mxu0 0.0
        %471 = vmatmul.mubr.f32.gmra.mxu0 %v373
        %v472 = vpop.f32.mrf.mxu0
        %v473 = vadd.f32 0.0, %v472
        %v474 = vpop.f32.mrf.mxu0
        %475 = vmatprep.mubr.f32.mxu0 0.0
        %476 = vmatmul.mubr.f32.gmra.mxu0 %v374
        %v477 = vpop.f32.mrf.mxu0
        %v478 = vadd.f32 0.0, %v477
        %v479 = vpop.f32.mrf.mxu0
        %480 = vmatprep.mubr.f32.mxu0 0.0
        %481 = vmatmul.mubr.f32.gmra.mxu0 %v375
        %v482 = vpop.f32.mrf.mxu0
        %v483 = vadd.f32 0.0, %v482
        %v484 = vpop.f32.mrf.mxu0
        %485 = vmatprep.mubr.f32.mxu0 0.0
        %486 = vmatmul.mubr.f32.gmra.mxu0 %v376
        %v487 = vpop.f32.mrf.mxu0
        %v488 = vadd.f32 0.0, %v487
        %v489 = vpop.f32.mrf.mxu0
        %490 = vmatprep.mubr.f32.mxu0 0.0
        %491 = vmatmul.mubr.f32.gmra.mxu0 %v377
        %v492 = vpop.f32.mrf.mxu0
        %v493 = vadd.f32 0.0, %v492
        %v494 = vpop.f32.mrf.mxu0
        %495 = vmatprep.mubr.f32.mxu0 0.0
        %496 = vmatmul.mubr.f32.gmra.mxu0 %v378
        %v497 = vpop.f32.mrf.mxu0
        %v498 = vadd.f32 0.0, %v497
        %v499 = vpop.f32.mrf.mxu0
        %500 = vdwg.mxu0
        %501 = vmatprep.subr.mxu0 0.0
        %502 = vmatpush1.msra.mxu0 %v369
        %503 = vmatprep.subr.mxu0 0.0
        %504 = vmatpush1.msra.mxu0 %v368
        %505 = vmatprep.subr.mxu0 0.0
        %506 = vmatpush1.msra.mxu0 %v367
        %507 = vmatprep.subr.mxu0 0.0
        %508 = vmatpush1.msra.mxu0 %v366
        %509 = vmatprep.subr.mxu0 0.0
        %510 = vmatpush1.msra.mxu0 %v365
        %511 = vmatprep.subr.mxu0 0.0
        %512 = vmatpush1.msra.mxu0 %v364
        %513 = vmatprep.subr.mxu0 0.0
        %514 = vmatpush1.msra.mxu0 %v363
        %515 = vmatprep.subr.mxu0 0.0
        %516 = vmatpush1.msra.mxu0 %v362
        %517 = vmatprep.subr.mxu0 0.0
        %518 = vmatpush1.msra.mxu0 %v361
        %519 = vmatprep.subr.mxu0 0.0
        %520 = vmatpush1.msra.mxu0 %v360
        %521 = vmatprep.subr.mxu0 0.0
        %522 = vmatpush1.msra.mxu0 %v359
        %523 = vmatprep.subr.mxu0 0.0
        %524 = vmatpush1.msra.mxu0 %v358
        %525 = vmatprep.subr.mxu0 0.0
        %526 = vmatpush1.msra.mxu0 %v357
        %527 = vmatprep.subr.mxu0 0.0
        %528 = vmatpush1.msra.mxu0 %v356
        %529 = vmatprep.subr.mxu0 0.0
        %530 = vmatpush1.msra.mxu0 %v355
        %531 = vmatprep.subr.mxu0 0.0
        %532 = vmatpush1.msra.mxu0 %v354
        %533 = vmatprep.subr.mxu0 0.0
        %534 = vmatpush2.msra.mxu0 0.0
        %535 = vmatprep.subr.mxu0 0.0
        %536 = vmatpush2.msra.mxu0 0.0
        %537 = vmatprep.subr.mxu0 0.0
        %538 = vmatpush2.msra.mxu0 0.0
        %539 = vmatprep.subr.mxu0 0.0
        %540 = vmatpush2.msra.mxu0 0.0
        %541 = vmatprep.subr.mxu0 0.0
        %542 = vmatpush2.msra.mxu0 0.0
        %543 = vmatprep.subr.mxu0 0.0
        %544 = vmatpush2.msra.mxu0 0.0
        %545 = vmatprep.subr.mxu0 0.0
        %546 = vmatpush2.msra.mxu0 0.0
        %547 = vmatprep.subr.mxu0 0.0
        %548 = vmatpush2.msra.mxu0 0.0
        %549 = vmatprep.subr.mxu0 0.0
        %550 = vmatpush2.msra.mxu0 0.0
        %551 = vmatprep.subr.mxu0 0.0
        %552 = vmatpush2.msra.mxu0 0.0
        %553 = vmatprep.subr.mxu0 0.0
        %554 = vmatpush2.msra.mxu0 0.0
        %555 = vmatprep.subr.mxu0 0.0
        %556 = vmatpush2.msra.mxu0 0.0
        %557 = vmatprep.subr.mxu0 0.0
        %558 = vmatpush2.msra.mxu0 0.0
        %559 = vmatprep.subr.mxu0 0.0
        %560 = vmatpush2.msra.mxu0 0.0
        %561 = vmatprep.subr.mxu0 0.0
        %562 = vmatpush2.msra.mxu0 0.0
        %563 = vmatprep.subr.mxu0 0.0
        %564 = vmatpush2.msra.mxu0 0.0
        %565 = vmatprep.mubr.f32.mxu0 0.0
        %566 = vmatmul.mubr.f32.gmra.mxu0 %v346
        %v567 = vpop.f32.mrf.mxu0
        %v568 = vadd.f32 %v463, %v567
        %v569 = vpop.f32.mrf.mxu0
        %570 = vmatprep.mubr.f32.mxu0 0.0
        %571 = vmatmul.mubr.f32.gmra.mxu0 %v347
        %v572 = vpop.f32.mrf.mxu0
        %v573 = vadd.f32 %v468, %v572
        %v574 = vpop.f32.mrf.mxu0
        %575 = vmatprep.mubr.f32.mxu0 0.0
        %576 = vmatmul.mubr.f32.gmra.mxu0 %v348
        %v577 = vpop.f32.mrf.mxu0
        %v578 = vadd.f32 %v473, %v577
        %v579 = vpop.f32.mrf.mxu0
        %580 = vmatprep.mubr.f32.mxu0 0.0
        %581 = vmatmul.mubr.f32.gmra.mxu0 %v349
        %v582 = vpop.f32.mrf.mxu0
        %v583 = vadd.f32 %v478, %v582
        %v584 = vpop.f32.mrf.mxu0
        %585 = vmatprep.mubr.f32.mxu0 0.0
        %586 = vmatmul.mubr.f32.gmra.mxu0 %v350
        %v587 = vpop.f32.mrf.mxu0
        %v588 = vadd.f32 %v483, %v587
        %v589 = vpop.f32.mrf.mxu0
        %590 = vmatprep.mubr.f32.mxu0 0.0
        %591 = vmatmul.mubr.f32.gmra.mxu0 %v351
        %v592 = vpop.f32.mrf.mxu0
        %v593 = vadd.f32 %v488, %v592
        %v594 = vpop.f32.mrf.mxu0
        %595 = vmatprep.mubr.f32.mxu0 0.0
        %596 = vmatmul.mubr.f32.gmra.mxu0 %v352
        %v597 = vpop.f32.mrf.mxu0
        %v598 = vadd.f32 %v493, %v597
        %v599 = vpop.f32.mrf.mxu0
        %600 = vmatprep.mubr.f32.mxu0 0.0
        %601 = vmatmul.mubr.f32.gmra.mxu0 %v353
        %v602 = vpop.f32.mrf.mxu0
        %v603 = vadd.f32 %v498, %v602
        %v604 = vpop.f32.mrf.mxu0
        %605 = vdwg.mxu0
        %v606 = vld [vmem:[#allocation2 + $0x1] sm:$0xff]
        %v607 = vld [vmem:[#allocation2 + $0x11] sm:$0xff]
        %v608 = vld [vmem:[#allocation2 + $0x21] sm:$0xff]
        %v609 = vld [vmem:[#allocation2 + $0x31] sm:$0xff]
        %v610 = vld [vmem:[#allocation2 + $0x41] sm:$0xff]
        %v611 = vld [vmem:[#allocation2 + $0x51] sm:$0xff]
        %v612 = vld [vmem:[#allocation2 + $0x61] sm:$0xff]
        %v613 = vld [vmem:[#allocation2 + $0x71] sm:$0xff]
        %s614 = scalar_lea.vmem [#allocation6], 256
        %v615 = vld [vmem:[%s614] sm:$0xff]
        %v616 = vld [vmem:[%s614 + $0x8] sm:$0xff]
        %v617 = vld [vmem:[%s614 + $0x10] sm:$0xff]
        %v618 = vld [vmem:[%s614 + $0x18] sm:$0xff]
        %v619 = vld [vmem:[%s614 + $0x20] sm:$0xff]
        %v620 = vld [vmem:[%s614 + $0x28] sm:$0xff]
        %v621 = vld [vmem:[%s614 + $0x30] sm:$0xff]
        %v622 = vld [vmem:[%s614 + $0x38] sm:$0xff]
        %v623 = vld [vmem:[%s614 + $0x40] sm:$0xff]
        %v624 = vld [vmem:[%s614 + $0x48] sm:$0xff]
        %v625 = vld [vmem:[%s614 + $0x50] sm:$0xff]
        %v626 = vld [vmem:[%s614 + $0x58] sm:$0xff]
        %v627 = vld [vmem:[%s614 + $0x60] sm:$0xff]
        %v628 = vld [vmem:[%s614 + $0x68] sm:$0xff]
        %v629 = vld [vmem:[%s614 + $0x70] sm:$0xff]
        %v630 = vld [vmem:[%s614 + $0x78] sm:$0xff]
        %631 = vmatprep.subr.mxu0 0.0
        %632 = vmatpush1.msra.mxu0 %v630
        %633 = vmatprep.subr.mxu0 0.0
        %634 = vmatpush1.msra.mxu0 %v629
        %635 = vmatprep.subr.mxu0 0.0
        %636 = vmatpush1.msra.mxu0 %v628
        %637 = vmatprep.subr.mxu0 0.0
        %638 = vmatpush1.msra.mxu0 %v627
        %639 = vmatprep.subr.mxu0 0.0
        %640 = vmatpush1.msra.mxu0 %v626
        %641 = vmatprep.subr.mxu0 0.0
        %642 = vmatpush1.msra.mxu0 %v625
        %643 = vmatprep.subr.mxu0 0.0
        %644 = vmatpush1.msra.mxu0 %v624
        %645 = vmatprep.subr.mxu0 0.0
        %646 = vmatpush1.msra.mxu0 %v623
        %647 = vmatprep.subr.mxu0 0.0
        %648 = vmatpush1.msra.mxu0 %v622
        %649 = vmatprep.subr.mxu0 0.0
        %650 = vmatpush1.msra.mxu0 %v621
        %651 = vmatprep.subr.mxu0 0.0
        %652 = vmatpush1.msra.mxu0 %v620
        %653 = vmatprep.subr.mxu0 0.0
        %654 = vmatpush1.msra.mxu0 %v619
        %655 = vmatprep.subr.mxu0 0.0
        %656 = vmatpush1.msra.mxu0 %v618
        %657 = vmatprep.subr.mxu0 0.0
        %658 = vmatpush1.msra.mxu0 %v617
        %659 = vmatprep.subr.mxu0 0.0
        %660 = vmatpush1.msra.mxu0 %v616
        %661 = vmatprep.subr.mxu0 0.0
        %662 = vmatpush1.msra.mxu0 %v615
        %663 = vmatprep.subr.mxu0 0.0
        %664 = vmatpush2.msra.mxu0 0.0
        %665 = vmatprep.subr.mxu0 0.0
        %666 = vmatpush2.msra.mxu0 0.0
        %667 = vmatprep.subr.mxu0 0.0
        %668 = vmatpush2.msra.mxu0 0.0
        %669 = vmatprep.subr.mxu0 0.0
        %670 = vmatpush2.msra.mxu0 0.0
        %671 = vmatprep.subr.mxu0 0.0
        %672 = vmatpush2.msra.mxu0 0.0
        %673 = vmatprep.subr.mxu0 0.0
        %674 = vmatpush2.msra.mxu0 0.0
        %675 = vmatprep.subr.mxu0 0.0
        %676 = vmatpush2.msra.mxu0 0.0
        %677 = vmatprep.subr.mxu0 0.0
        %678 = vmatpush2.msra.mxu0 0.0
        %679 = vmatprep.subr.mxu0 0.0
        %680 = vmatpush2.msra.mxu0 0.0
        %681 = vmatprep.subr.mxu0 0.0
        %682 = vmatpush2.msra.mxu0 0.0
        %683 = vmatprep.subr.mxu0 0.0
        %684 = vmatpush2.msra.mxu0 0.0
        %685 = vmatprep.subr.mxu0 0.0
        %686 = vmatpush2.msra.mxu0 0.0
        %687 = vmatprep.subr.mxu0 0.0
        %688 = vmatpush2.msra.mxu0 0.0
        %689 = vmatprep.subr.mxu0 0.0
        %690 = vmatpush2.msra.mxu0 0.0
        %691 = vmatprep.subr.mxu0 0.0
        %692 = vmatpush2.msra.mxu0 0.0
        %693 = vmatprep.subr.mxu0 0.0
        %694 = vmatpush2.msra.mxu0 0.0
        %695 = vmatprep.mubr.f32.mxu0 0.0
        %696 = vmatmul.mubr.f32.gmra.mxu0 %v606
        %v697 = vpop.f32.mrf.mxu0
        %v698 = vadd.f32 0.0, %v697
        %v699 = vpop.f32.mrf.mxu0
        %700 = vmatprep.mubr.f32.mxu0 0.0
        %701 = vmatmul.mubr.f32.gmra.mxu0 %v607
        %v702 = vpop.f32.mrf.mxu0
        %v703 = vadd.f32 0.0, %v702
        %v704 = vpop.f32.mrf.mxu0
        %705 = vmatprep.mubr.f32.mxu0 0.0
        %706 = vmatmul.mubr.f32.gmra.mxu0 %v608
        %v707 = vpop.f32.mrf.mxu0
        %v708 = vadd.f32 0.0, %v707
        %v709 = vpop.f32.mrf.mxu0
        %710 = vmatprep.mubr.f32.mxu0 0.0
        %711 = vmatmul.mubr.f32.gmra.mxu0 %v609
        %v712 = vpop.f32.mrf.mxu0
        %v713 = vadd.f32 0.0, %v712
        %v714 = vpop.f32.mrf.mxu0
        %715 = vmatprep.mubr.f32.mxu0 0.0
        %716 = vmatmul.mubr.f32.gmra.mxu0 %v610
        %v717 = vpop.f32.mrf.mxu0
        %v718 = vadd.f32 0.0, %v717
        %v719 = vpop.f32.mrf.mxu0
        %720 = vmatprep.mubr.f32.mxu0 0.0
        %721 = vmatmul.mubr.f32.gmra.mxu0 %v611
        %v722 = vpop.f32.mrf.mxu0
        %v723 = vadd.f32 0.0, %v722
        %v724 = vpop.f32.mrf.mxu0
        %725 = vmatprep.mubr.f32.mxu0 0.0
        %726 = vmatmul.mubr.f32.gmra.mxu0 %v612
        %v727 = vpop.f32.mrf.mxu0
        %v728 = vadd.f32 0.0, %v727
        %v729 = vpop.f32.mrf.mxu0
        %730 = vmatprep.mubr.f32.mxu0 0.0
        %731 = vmatmul.mubr.f32.gmra.mxu0 %v613
        %v732 = vpop.f32.mrf.mxu0
        %v733 = vadd.f32 0.0, %v732
        %v734 = vpop.f32.mrf.mxu0
        %735 = vdwg.mxu0
        %v736 = vadd.f32 %v568, %v698
        %v737 = vadd.f32 %v573, %v703
        %v738 = vadd.f32 %v578, %v708
        %v739 = vadd.f32 %v583, %v713
        %v740 = vadd.f32 %v588, %v718
        %v741 = vadd.f32 %v593, %v723
        %v742 = vadd.f32 %v598, %v728
        %v743 = vadd.f32 %v603, %v733
        %v744 = vld [vmem:[%s328] sm:$0xff]
        %v745 = vld [vmem:[%s328 + $0x10] sm:$0xff]
        %v746 = vld [vmem:[%s328 + $0x20] sm:$0xff]
        %v747 = vld [vmem:[%s328 + $0x30] sm:$0xff]
        %v748 = vld [vmem:[%s328 + $0x40] sm:$0xff]
        %v749 = vld [vmem:[%s328 + $0x50] sm:$0xff]
        %v750 = vld [vmem:[%s328 + $0x60] sm:$0xff]
        %v751 = vld [vmem:[%s328 + $0x70] sm:$0xff]
        %s752 = scalar_lea.vmem [#allocation6], 384
        %v753 = vld [vmem:[%s752] sm:$0xff]
        %v754 = vld [vmem:[%s752 + $0x8] sm:$0xff]
        %v755 = vld [vmem:[%s752 + $0x10] sm:$0xff]
        %v756 = vld [vmem:[%s752 + $0x18] sm:$0xff]
        %v757 = vld [vmem:[%s752 + $0x20] sm:$0xff]
        %v758 = vld [vmem:[%s752 + $0x28] sm:$0xff]
        %v759 = vld [vmem:[%s752 + $0x30] sm:$0xff]
        %v760 = vld [vmem:[%s752 + $0x38] sm:$0xff]
        %v761 = vld [vmem:[%s752 + $0x40] sm:$0xff]
        %v762 = vld [vmem:[%s752 + $0x48] sm:$0xff]
        %v763 = vld [vmem:[%s752 + $0x50] sm:$0xff]
        %v764 = vld [vmem:[%s752 + $0x58] sm:$0xff]
        %v765 = vld [vmem:[%s752 + $0x60] sm:$0xff]
        %v766 = vld [vmem:[%s752 + $0x68] sm:$0xff]
        %v767 = vld [vmem:[%s752 + $0x70] sm:$0xff]
        %v768 = vld [vmem:[%s752 + $0x78] sm:$0xff]
        %769 = vmatprep.subr.mxu0 0.0
        %770 = vmatpush1.msra.mxu0 %v768
        %771 = vmatprep.subr.mxu0 0.0
        %772 = vmatpush1.msra.mxu0 %v767
        %773 = vmatprep.subr.mxu0 0.0
        %774 = vmatpush1.msra.mxu0 %v766
        %775 = vmatprep.subr.mxu0 0.0
        %776 = vmatpush1.msra.mxu0 %v765
        %777 = vmatprep.subr.mxu0 0.0
        %778 = vmatpush1.msra.mxu0 %v764
        %779 = vmatprep.subr.mxu0 0.0
        %780 = vmatpush1.msra.mxu0 %v763
        %781 = vmatprep.subr.mxu0 0.0
        %782 = vmatpush1.msra.mxu0 %v762
        %783 = vmatprep.subr.mxu0 0.0
        %784 = vmatpush1.msra.mxu0 %v761
        %785 = vmatprep.subr.mxu0 0.0
        %786 = vmatpush1.msra.mxu0 %v760
        %787 = vmatprep.subr.mxu0 0.0
        %788 = vmatpush1.msra.mxu0 %v759
        %789 = vmatprep.subr.mxu0 0.0
        %790 = vmatpush1.msra.mxu0 %v758
        %791 = vmatprep.subr.mxu0 0.0
        %792 = vmatpush1.msra.mxu0 %v757
        %793 = vmatprep.subr.mxu0 0.0
        %794 = vmatpush1.msra.mxu0 %v756
        %795 = vmatprep.subr.mxu0 0.0
        %796 = vmatpush1.msra.mxu0 %v755
        %797 = vmatprep.subr.mxu0 0.0
        %798 = vmatpush1.msra.mxu0 %v754
        %799 = vmatprep.subr.mxu0 0.0
        %800 = vmatpush1.msra.mxu0 %v753
        %801 = vmatprep.subr.mxu0 0.0
        %802 = vmatpush2.msra.mxu0 0.0
        %803 = vmatprep.subr.mxu0 0.0
        %804 = vmatpush2.msra.mxu0 0.0
        %805 = vmatprep.subr.mxu0 0.0
        %806 = vmatpush2.msra.mxu0 0.0
        %807 = vmatprep.subr.mxu0 0.0
        %808 = vmatpush2.msra.mxu0 0.0
        %809 = vmatprep.subr.mxu0 0.0
        %810 = vmatpush2.msra.mxu0 0.0
        %811 = vmatprep.subr.mxu0 0.0
        %812 = vmatpush2.msra.mxu0 0.0
        %813 = vmatprep.subr.mxu0 0.0
        %814 = vmatpush2.msra.mxu0 0.0
        %815 = vmatprep.subr.mxu0 0.0
        %816 = vmatpush2.msra.mxu0 0.0
        %817 = vmatprep.subr.mxu0 0.0
        %818 = vmatpush2.msra.mxu0 0.0
        %819 = vmatprep.subr.mxu0 0.0
        %820 = vmatpush2.msra.mxu0 0.0
        %821 = vmatprep.subr.mxu0 0.0
        %822 = vmatpush2.msra.mxu0 0.0
        %823 = vmatprep.subr.mxu0 0.0
        %824 = vmatpush2.msra.mxu0 0.0
        %825 = vmatprep.subr.mxu0 0.0
        %826 = vmatpush2.msra.mxu0 0.0
        %827 = vmatprep.subr.mxu0 0.0
        %828 = vmatpush2.msra.mxu0 0.0
        %829 = vmatprep.subr.mxu0 0.0
        %830 = vmatpush2.msra.mxu0 0.0
        %831 = vmatprep.subr.mxu0 0.0
        %832 = vmatpush2.msra.mxu0 0.0
        %833 = vmatprep.mubr.f32.mxu0 0.0
        %834 = vmatmul.mubr.f32.gmra.mxu0 %v744
        %v835 = vpop.f32.mrf.mxu0
        %v836 = vadd.f32 0.0, %v835
        %v837 = vpop.f32.mrf.mxu0
        %838 = vmatprep.mubr.f32.mxu0 0.0
        %839 = vmatmul.mubr.f32.gmra.mxu0 %v745
        %v840 = vpop.f32.mrf.mxu0
        %v841 = vadd.f32 0.0, %v840
        %v842 = vpop.f32.mrf.mxu0
        %843 = vmatprep.mubr.f32.mxu0 0.0
        %844 = vmatmul.mubr.f32.gmra.mxu0 %v746
        %v845 = vpop.f32.mrf.mxu0
        %v846 = vadd.f32 0.0, %v845
        %v847 = vpop.f32.mrf.mxu0
        %848 = vmatprep.mubr.f32.mxu0 0.0
        %849 = vmatmul.mubr.f32.gmra.mxu0 %v747
        %v850 = vpop.f32.mrf.mxu0
        %v851 = vadd.f32 0.0, %v850
        %v852 = vpop.f32.mrf.mxu0
        %853 = vmatprep.mubr.f32.mxu0 0.0
        %854 = vmatmul.mubr.f32.gmra.mxu0 %v748
        %v855 = vpop.f32.mrf.mxu0
        %v856 = vadd.f32 0.0, %v855
        %v857 = vpop.f32.mrf.mxu0
        %858 = vmatprep.mubr.f32.mxu0 0.0
        %859 = vmatmul.mubr.f32.gmra.mxu0 %v749
        %v860 = vpop.f32.mrf.mxu0
        %v861 = vadd.f32 0.0, %v860
        %v862 = vpop.f32.mrf.mxu0
        %863 = vmatprep.mubr.f32.mxu0 0.0
        %864 = vmatmul.mubr.f32.gmra.mxu0 %v750
        %v865 = vpop.f32.mrf.mxu0
        %v866 = vadd.f32 0.0, %v865
        %v867 = vpop.f32.mrf.mxu0
        %868 = vmatprep.mubr.f32.mxu0 0.0
        %869 = vmatmul.mubr.f32.gmra.mxu0 %v751
        %v870 = vpop.f32.mrf.mxu0
        %v871 = vadd.f32 0.0, %v870
        %v872 = vpop.f32.mrf.mxu0
        %873 = vdwg.mxu0
        %v874 = vadd.f32 %v736, %v836
        %v875 = vadd.f32 %v737, %v841
        %v876 = vadd.f32 %v738, %v846
        %v877 = vadd.f32 %v739, %v851
        %v878 = vadd.f32 %v740, %v856
        %v879 = vadd.f32 %v741, %v861
        %v880 = vadd.f32 %v742, %v866
        %v881 = vadd.f32 %v743, %v871
        %v882 = vld [vmem:[%s309] sm:$0xff]
        %v883 = vld [vmem:[%s309 + $0x10] sm:$0xff]
        %v884 = vld [vmem:[%s309 + $0x20] sm:$0xff]
        %v885 = vld [vmem:[%s309 + $0x30] sm:$0xff]
        %v886 = vld [vmem:[%s309 + $0x40] sm:$0xff]
        %v887 = vld [vmem:[%s309 + $0x50] sm:$0xff]
        %v888 = vld [vmem:[%s309 + $0x60] sm:$0xff]
        %v889 = vld [vmem:[%s309 + $0x70] sm:$0xff]
        %s890 = scalar_lea.vmem [#allocation6], 512
        %v891 = vld [vmem:[%s890] sm:$0xff]
        %v892 = vld [vmem:[%s890 + $0x8] sm:$0xff]
        %v893 = vld [vmem:[%s890 + $0x10] sm:$0xff]
        %v894 = vld [vmem:[%s890 + $0x18] sm:$0xff]
        %v895 = vld [vmem:[%s890 + $0x20] sm:$0xff]
        %v896 = vld [vmem:[%s890 + $0x28] sm:$0xff]
        %v897 = vld [vmem:[%s890 + $0x30] sm:$0xff]
        %v898 = vld [vmem:[%s890 + $0x38] sm:$0xff]
        %v899 = vld [vmem:[%s890 + $0x40] sm:$0xff]
        %v900 = vld [vmem:[%s890 + $0x48] sm:$0xff]
        %v901 = vld [vmem:[%s890 + $0x50] sm:$0xff]
        %v902 = vld [vmem:[%s890 + $0x58] sm:$0xff]
        %v903 = vld [vmem:[%s890 + $0x60] sm:$0xff]
        %v904 = vld [vmem:[%s890 + $0x68] sm:$0xff]
        %v905 = vld [vmem:[%s890 + $0x70] sm:$0xff]
        %v906 = vld [vmem:[%s890 + $0x78] sm:$0xff]
        %907 = vmatprep.subr.mxu0 0.0
        %908 = vmatpush1.msra.mxu0 %v906
        %909 = vmatprep.subr.mxu0 0.0
        %910 = vmatpush1.msra.mxu0 %v905
        %911 = vmatprep.subr.mxu0 0.0
        %912 = vmatpush1.msra.mxu0 %v904
        %913 = vmatprep.subr.mxu0 0.0
        %914 = vmatpush1.msra.mxu0 %v903
        %915 = vmatprep.subr.mxu0 0.0
        %916 = vmatpush1.msra.mxu0 %v902
        %917 = vmatprep.subr.mxu0 0.0
        %918 = vmatpush1.msra.mxu0 %v901
        %919 = vmatprep.subr.mxu0 0.0
        %920 = vmatpush1.msra.mxu0 %v900
        %921 = vmatprep.subr.mxu0 0.0
        %922 = vmatpush1.msra.mxu0 %v899
        %923 = vmatprep.subr.mxu0 0.0
        %924 = vmatpush1.msra.mxu0 %v898
        %925 = vmatprep.subr.mxu0 0.0
        %926 = vmatpush1.msra.mxu0 %v897
        %927 = vmatprep.subr.mxu0 0.0
        %928 = vmatpush1.msra.mxu0 %v896
        %929 = vmatprep.subr.mxu0 0.0
        %930 = vmatpush1.msra.mxu0 %v895
        %931 = vmatprep.subr.mxu0 0.0
        %932 = vmatpush1.msra.mxu0 %v894
        %933 = vmatprep.subr.mxu0 0.0
        %934 = vmatpush1.msra.mxu0 %v893
        %935 = vmatprep.subr.mxu0 0.0
        %936 = vmatpush1.msra.mxu0 %v892
        %937 = vmatprep.subr.mxu0 0.0
        %938 = vmatpush1.msra.mxu0 %v891
        %939 = vmatprep.subr.mxu0 0.0
        %940 = vmatpush2.msra.mxu0 0.0
        %941 = vmatprep.subr.mxu0 0.0
        %942 = vmatpush2.msra.mxu0 0.0
        %943 = vmatprep.subr.mxu0 0.0
        %944 = vmatpush2.msra.mxu0 0.0
        %945 = vmatprep.subr.mxu0 0.0
        %946 = vmatpush2.msra.mxu0 0.0
        %947 = vmatprep.subr.mxu0 0.0
        %948 = vmatpush2.msra.mxu0 0.0
        %949 = vmatprep.subr.mxu0 0.0
        %950 = vmatpush2.msra.mxu0 0.0
        %951 = vmatprep.subr.mxu0 0.0
        %952 = vmatpush2.msra.mxu0 0.0
        %953 = vmatprep.subr.mxu0 0.0
        %954 = vmatpush2.msra.mxu0 0.0
        %955 = vmatprep.subr.mxu0 0.0
        %956 = vmatpush2.msra.mxu0 0.0
        %957 = vmatprep.subr.mxu0 0.0
        %958 = vmatpush2.msra.mxu0 0.0
        %959 = vmatprep.subr.mxu0 0.0
        %960 = vmatpush2.msra.mxu0 0.0
        %961 = vmatprep.subr.mxu0 0.0
        %962 = vmatpush2.msra.mxu0 0.0
        %963 = vmatprep.subr.mxu0 0.0
        %964 = vmatpush2.msra.mxu0 0.0
        %965 = vmatprep.subr.mxu0 0.0
        %966 = vmatpush2.msra.mxu0 0.0
        %967 = vmatprep.subr.mxu0 0.0
        %968 = vmatpush2.msra.mxu0 0.0
        %969 = vmatprep.subr.mxu0 0.0
        %970 = vmatpush2.msra.mxu0 0.0
        %971 = vmatprep.mubr.f32.mxu0 0.0
        %972 = vmatmul.mubr.f32.gmra.mxu0 %v882
        %v973 = vpop.f32.mrf.mxu0
        %v974 = vadd.f32 0.0, %v973
        %v975 = vpop.f32.mrf.mxu0
        %976 = vmatprep.mubr.f32.mxu0 0.0
        %977 = vmatmul.mubr.f32.gmra.mxu0 %v883
        %v978 = vpop.f32.mrf.mxu0
        %v979 = vadd.f32 0.0, %v978
        %v980 = vpop.f32.mrf.mxu0
        %981 = vmatprep.mubr.f32.mxu0 0.0
        %982 = vmatmul.mubr.f32.gmra.mxu0 %v884
        %v983 = vpop.f32.mrf.mxu0
        %v984 = vadd.f32 0.0, %v983
        %v985 = vpop.f32.mrf.mxu0
        %986 = vmatprep.mubr.f32.mxu0 0.0
        %987 = vmatmul.mubr.f32.gmra.mxu0 %v885
        %v988 = vpop.f32.mrf.mxu0
        %v989 = vadd.f32 0.0, %v988
        %v990 = vpop.f32.mrf.mxu0
        %991 = vmatprep.mubr.f32.mxu0 0.0
        %992 = vmatmul.mubr.f32.gmra.mxu0 %v886
        %v993 = vpop.f32.mrf.mxu0
        %v994 = vadd.f32 0.0, %v993
        %v995 = vpop.f32.mrf.mxu0
        %996 = vmatprep.mubr.f32.mxu0 0.0
        %997 = vmatmul.mubr.f32.gmra.mxu0 %v887
        %v998 = vpop.f32.mrf.mxu0
        %v999 = vadd.f32 0.0, %v998
        %v1000 = vpop.f32.mrf.mxu0
        %1001 = vmatprep.mubr.f32.mxu0 0.0
        %1002 = vmatmul.mubr.f32.gmra.mxu0 %v888
        %v1003 = vpop.f32.mrf.mxu0
        %v1004 = vadd.f32 0.0, %v1003
        %v1005 = vpop.f32.mrf.mxu0
        %1006 = vmatprep.mubr.f32.mxu0 0.0
        %1007 = vmatmul.mubr.f32.gmra.mxu0 %v889
        %v1008 = vpop.f32.mrf.mxu0
        %v1009 = vadd.f32 0.0, %v1008
        %v1010 = vpop.f32.mrf.mxu0
        %1011 = vdwg.mxu0
        %v1012 = vadd.f32 %v874, %v974
        %v1013 = vadd.f32 %v875, %v979
        %v1014 = vadd.f32 %v876, %v984
        %v1015 = vadd.f32 %v877, %v989
        %v1016 = vadd.f32 %v878, %v994
        %v1017 = vadd.f32 %v879, %v999
        %v1018 = vadd.f32 %v880, %v1004
        %v1019 = vadd.f32 %v881, %v1009
        %v1020 = vld [vmem:[%s328 + $0x1] sm:$0xff]
        %v1021 = vld [vmem:[%s328 + $0x11] sm:$0xff]
        %v1022 = vld [vmem:[%s328 + $0x21] sm:$0xff]
        %v1023 = vld [vmem:[%s328 + $0x31] sm:$0xff]
        %v1024 = vld [vmem:[%s328 + $0x41] sm:$0xff]
        %v1025 = vld [vmem:[%s328 + $0x51] sm:$0xff]
        %v1026 = vld [vmem:[%s328 + $0x61] sm:$0xff]
        %v1027 = vld [vmem:[%s328 + $0x71] sm:$0xff]
        %s1028 = scalar_lea.vmem [#allocation6], 640
        %v1029 = vld [vmem:[%s1028] sm:$0xff]
        %v1030 = vld [vmem:[%s1028 + $0x8] sm:$0xff]
        %v1031 = vld [vmem:[%s1028 + $0x10] sm:$0xff]
        %v1032 = vld [vmem:[%s1028 + $0x18] sm:$0xff]
        %v1033 = vld [vmem:[%s1028 + $0x20] sm:$0xff]
        %v1034 = vld [vmem:[%s1028 + $0x28] sm:$0xff]
        %v1035 = vld [vmem:[%s1028 + $0x30] sm:$0xff]
        %v1036 = vld [vmem:[%s1028 + $0x38] sm:$0xff]
        %v1037 = vld [vmem:[%s1028 + $0x40] sm:$0xff]
        %v1038 = vld [vmem:[%s1028 + $0x48] sm:$0xff]
        %v1039 = vld [vmem:[%s1028 + $0x50] sm:$0xff]
        %v1040 = vld [vmem:[%s1028 + $0x58] sm:$0xff]
        %v1041 = vld [vmem:[%s1028 + $0x60] sm:$0xff]
        %v1042 = vld [vmem:[%s1028 + $0x68] sm:$0xff]
        %v1043 = vld [vmem:[%s1028 + $0x70] sm:$0xff]
        %v1044 = vld [vmem:[%s1028 + $0x78] sm:$0xff]
        %1045 = vmatprep.subr.mxu0 0.0
        %1046 = vmatpush1.msra.mxu0 %v1044
        %1047 = vmatprep.subr.mxu0 0.0
        %1048 = vmatpush1.msra.mxu0 %v1043
        %1049 = vmatprep.subr.mxu0 0.0
        %1050 = vmatpush1.msra.mxu0 %v1042
        %1051 = vmatprep.subr.mxu0 0.0
        %1052 = vmatpush1.msra.mxu0 %v1041
        %1053 = vmatprep.subr.mxu0 0.0
        %1054 = vmatpush1.msra.mxu0 %v1040
        %1055 = vmatprep.subr.mxu0 0.0
        %1056 = vmatpush1.msra.mxu0 %v1039
        %1057 = vmatprep.subr.mxu0 0.0
        %1058 = vmatpush1.msra.mxu0 %v1038
        %1059 = vmatprep.subr.mxu0 0.0
        %1060 = vmatpush1.msra.mxu0 %v1037
        %1061 = vmatprep.subr.mxu0 0.0
        %1062 = vmatpush1.msra.mxu0 %v1036
        %1063 = vmatprep.subr.mxu0 0.0
        %1064 = vmatpush1.msra.mxu0 %v1035
        %1065 = vmatprep.subr.mxu0 0.0
        %1066 = vmatpush1.msra.mxu0 %v1034
        %1067 = vmatprep.subr.mxu0 0.0
        %1068 = vmatpush1.msra.mxu0 %v1033
        %1069 = vmatprep.subr.mxu0 0.0
        %1070 = vmatpush1.msra.mxu0 %v1032
        %1071 = vmatprep.subr.mxu0 0.0
        %1072 = vmatpush1.msra.mxu0 %v1031
        %1073 = vmatprep.subr.mxu0 0.0
        %1074 = vmatpush1.msra.mxu0 %v1030
        %1075 = vmatprep.subr.mxu0 0.0
        %1076 = vmatpush1.msra.mxu0 %v1029
        %1077 = vmatprep.subr.mxu0 0.0
        %1078 = vmatpush2.msra.mxu0 0.0
        %1079 = vmatprep.subr.mxu0 0.0
        %1080 = vmatpush2.msra.mxu0 0.0
        %1081 = vmatprep.subr.mxu0 0.0
        %1082 = vmatpush2.msra.mxu0 0.0
        %1083 = vmatprep.subr.mxu0 0.0
        %1084 = vmatpush2.msra.mxu0 0.0
        %1085 = vmatprep.subr.mxu0 0.0
        %1086 = vmatpush2.msra.mxu0 0.0
        %1087 = vmatprep.subr.mxu0 0.0
        %1088 = vmatpush2.msra.mxu0 0.0
        %1089 = vmatprep.subr.mxu0 0.0
        %1090 = vmatpush2.msra.mxu0 0.0
        %1091 = vmatprep.subr.mxu0 0.0
        %1092 = vmatpush2.msra.mxu0 0.0
        %1093 = vmatprep.subr.mxu0 0.0
        %1094 = vmatpush2.msra.mxu0 0.0
        %1095 = vmatprep.subr.mxu0 0.0
        %1096 = vmatpush2.msra.mxu0 0.0
        %1097 = vmatprep.subr.mxu0 0.0
        %1098 = vmatpush2.msra.mxu0 0.0
        %1099 = vmatprep.subr.mxu0 0.0
        %1100 = vmatpush2.msra.mxu0 0.0
        %1101 = vmatprep.subr.mxu0 0.0
        %1102 = vmatpush2.msra.mxu0 0.0
        %1103 = vmatprep.subr.mxu0 0.0
        %1104 = vmatpush2.msra.mxu0 0.0
        %1105 = vmatprep.subr.mxu0 0.0
        %1106 = vmatpush2.msra.mxu0 0.0
        %1107 = vmatprep.subr.mxu0 0.0
        %1108 = vmatpush2.msra.mxu0 0.0
        %1109 = vmatprep.mubr.f32.mxu0 0.0
        %1110 = vmatmul.mubr.f32.gmra.mxu0 %v1020
        %v1111 = vpop.f32.mrf.mxu0
        %v1112 = vadd.f32 0.0, %v1111
        %v1113 = vpop.f32.mrf.mxu0
        %1114 = vmatprep.mubr.f32.mxu0 0.0
        %1115 = vmatmul.mubr.f32.gmra.mxu0 %v1021
        %v1116 = vpop.f32.mrf.mxu0
        %v1117 = vadd.f32 0.0, %v1116
        %v1118 = vpop.f32.mrf.mxu0
        %1119 = vmatprep.mubr.f32.mxu0 0.0
        %1120 = vmatmul.mubr.f32.gmra.mxu0 %v1022
        %v1121 = vpop.f32.mrf.mxu0
        %v1122 = vadd.f32 0.0, %v1121
        %v1123 = vpop.f32.mrf.mxu0
        %1124 = vmatprep.mubr.f32.mxu0 0.0
        %1125 = vmatmul.mubr.f32.gmra.mxu0 %v1023
        %v1126 = vpop.f32.mrf.mxu0
        %v1127 = vadd.f32 0.0, %v1126
        %v1128 = vpop.f32.mrf.mxu0
        %1129 = vmatprep.mubr.f32.mxu0 0.0
        %1130 = vmatmul.mubr.f32.gmra.mxu0 %v1024
        %v1131 = vpop.f32.mrf.mxu0
        %v1132 = vadd.f32 0.0, %v1131
        %v1133 = vpop.f32.mrf.mxu0
        %1134 = vmatprep.mubr.f32.mxu0 0.0
        %1135 = vmatmul.mubr.f32.gmra.mxu0 %v1025
        %v1136 = vpop.f32.mrf.mxu0
        %v1137 = vadd.f32 0.0, %v1136
        %v1138 = vpop.f32.mrf.mxu0
        %1139 = vmatprep.mubr.f32.mxu0 0.0
        %1140 = vmatmul.mubr.f32.gmra.mxu0 %v1026
        %v1141 = vpop.f32.mrf.mxu0
        %v1142 = vadd.f32 0.0, %v1141
        %v1143 = vpop.f32.mrf.mxu0
        %1144 = vmatprep.mubr.f32.mxu0 0.0
        %1145 = vmatmul.mubr.f32.gmra.mxu0 %v1027
        %v1146 = vpop.f32.mrf.mxu0
        %v1147 = vadd.f32 0.0, %v1146
        %v1148 = vpop.f32.mrf.mxu0
        %1149 = vdwg.mxu0
        %v1150 = vadd.f32 %v1012, %v1112
        %v1151 = vadd.f32 %v1013, %v1117
        %v1152 = vadd.f32 %v1014, %v1122
        %v1153 = vadd.f32 %v1015, %v1127
        %v1154 = vadd.f32 %v1016, %v1132
        %v1155 = vadd.f32 %v1017, %v1137
        %v1156 = vadd.f32 %v1018, %v1142
        %v1157 = vadd.f32 %v1019, %v1147
        %v1158 = vld [vmem:[%s337] sm:$0xff]
        %v1159 = vld [vmem:[%s337 + $0x10] sm:$0xff]
        %v1160 = vld [vmem:[%s337 + $0x20] sm:$0xff]
        %v1161 = vld [vmem:[%s337 + $0x30] sm:$0xff]
        %v1162 = vld [vmem:[%s337 + $0x40] sm:$0xff]
        %v1163 = vld [vmem:[%s337 + $0x50] sm:$0xff]
        %v1164 = vld [vmem:[%s337 + $0x60] sm:$0xff]
        %v1165 = vld [vmem:[%s337 + $0x70] sm:$0xff]
        %s1166 = scalar_lea.vmem [#allocation6], 768
        %v1167 = vld [vmem:[%s1166] sm:$0xff]
        %v1168 = vld [vmem:[%s1166 + $0x8] sm:$0xff]
        %v1169 = vld [vmem:[%s1166 + $0x10] sm:$0xff]
        %v1170 = vld [vmem:[%s1166 + $0x18] sm:$0xff]
        %v1171 = vld [vmem:[%s1166 + $0x20] sm:$0xff]
        %v1172 = vld [vmem:[%s1166 + $0x28] sm:$0xff]
        %v1173 = vld [vmem:[%s1166 + $0x30] sm:$0xff]
        %v1174 = vld [vmem:[%s1166 + $0x38] sm:$0xff]
        %v1175 = vld [vmem:[%s1166 + $0x40] sm:$0xff]
        %v1176 = vld [vmem:[%s1166 + $0x48] sm:$0xff]
        %v1177 = vld [vmem:[%s1166 + $0x50] sm:$0xff]
        %v1178 = vld [vmem:[%s1166 + $0x58] sm:$0xff]
        %v1179 = vld [vmem:[%s1166 + $0x60] sm:$0xff]
        %v1180 = vld [vmem:[%s1166 + $0x68] sm:$0xff]
        %v1181 = vld [vmem:[%s1166 + $0x70] sm:$0xff]
        %v1182 = vld [vmem:[%s1166 + $0x78] sm:$0xff]
        %1183 = vmatprep.subr.mxu0 0.0
        %1184 = vmatpush1.msra.mxu0 %v1182
        %1185 = vmatprep.subr.mxu0 0.0
        %1186 = vmatpush1.msra.mxu0 %v1181
        %1187 = vmatprep.subr.mxu0 0.0
        %1188 = vmatpush1.msra.mxu0 %v1180
        %1189 = vmatprep.subr.mxu0 0.0
        %1190 = vmatpush1.msra.mxu0 %v1179
        %1191 = vmatprep.subr.mxu0 0.0
        %1192 = vmatpush1.msra.mxu0 %v1178
        %1193 = vmatprep.subr.mxu0 0.0
        %1194 = vmatpush1.msra.mxu0 %v1177
        %1195 = vmatprep.subr.mxu0 0.0
        %1196 = vmatpush1.msra.mxu0 %v1176
        %1197 = vmatprep.subr.mxu0 0.0
        %1198 = vmatpush1.msra.mxu0 %v1175
        %1199 = vmatprep.subr.mxu0 0.0
        %1200 = vmatpush1.msra.mxu0 %v1174
        %1201 = vmatprep.subr.mxu0 0.0
        %1202 = vmatpush1.msra.mxu0 %v1173
        %1203 = vmatprep.subr.mxu0 0.0
        %1204 = vmatpush1.msra.mxu0 %v1172
        %1205 = vmatprep.subr.mxu0 0.0
        %1206 = vmatpush1.msra.mxu0 %v1171
        %1207 = vmatprep.subr.mxu0 0.0
        %1208 = vmatpush1.msra.mxu0 %v1170
        %1209 = vmatprep.subr.mxu0 0.0
        %1210 = vmatpush1.msra.mxu0 %v1169
        %1211 = vmatprep.subr.mxu0 0.0
        %1212 = vmatpush1.msra.mxu0 %v1168
        %1213 = vmatprep.subr.mxu0 0.0
        %1214 = vmatpush1.msra.mxu0 %v1167
        %1215 = vmatprep.subr.mxu0 0.0
        %1216 = vmatpush2.msra.mxu0 0.0
        %1217 = vmatprep.subr.mxu0 0.0
        %1218 = vmatpush2.msra.mxu0 0.0
        %1219 = vmatprep.subr.mxu0 0.0
        %1220 = vmatpush2.msra.mxu0 0.0
        %1221 = vmatprep.subr.mxu0 0.0
        %1222 = vmatpush2.msra.mxu0 0.0
        %1223 = vmatprep.subr.mxu0 0.0
        %1224 = vmatpush2.msra.mxu0 0.0
        %1225 = vmatprep.subr.mxu0 0.0
        %1226 = vmatpush2.msra.mxu0 0.0
        %1227 = vmatprep.subr.mxu0 0.0
        %1228 = vmatpush2.msra.mxu0 0.0
        %1229 = vmatprep.subr.mxu0 0.0
        %1230 = vmatpush2.msra.mxu0 0.0
        %1231 = vmatprep.subr.mxu0 0.0
        %1232 = vmatpush2.msra.mxu0 0.0
        %1233 = vmatprep.subr.mxu0 0.0
        %1234 = vmatpush2.msra.mxu0 0.0
        %1235 = vmatprep.subr.mxu0 0.0
        %1236 = vmatpush2.msra.mxu0 0.0
        %1237 = vmatprep.subr.mxu0 0.0
        %1238 = vmatpush2.msra.mxu0 0.0
        %1239 = vmatprep.subr.mxu0 0.0
        %1240 = vmatpush2.msra.mxu0 0.0
        %1241 = vmatprep.subr.mxu0 0.0
        %1242 = vmatpush2.msra.mxu0 0.0
        %1243 = vmatprep.subr.mxu0 0.0
        %1244 = vmatpush2.msra.mxu0 0.0
        %1245 = vmatprep.subr.mxu0 0.0
        %1246 = vmatpush2.msra.mxu0 0.0
        %1247 = vmatprep.mubr.f32.mxu0 0.0
        %1248 = vmatmul.mubr.f32.gmra.mxu0 %v1158
        %v1249 = vpop.f32.mrf.mxu0
        %v1250 = vadd.f32 0.0, %v1249
        %v1251 = vpop.f32.mrf.mxu0
        %1252 = vmatprep.mubr.f32.mxu0 0.0
        %1253 = vmatmul.mubr.f32.gmra.mxu0 %v1159
        %v1254 = vpop.f32.mrf.mxu0
        %v1255 = vadd.f32 0.0, %v1254
        %v1256 = vpop.f32.mrf.mxu0
        %1257 = vmatprep.mubr.f32.mxu0 0.0
        %1258 = vmatmul.mubr.f32.gmra.mxu0 %v1160
        %v1259 = vpop.f32.mrf.mxu0
        %v1260 = vadd.f32 0.0, %v1259
        %v1261 = vpop.f32.mrf.mxu0
        %1262 = vmatprep.mubr.f32.mxu0 0.0
        %1263 = vmatmul.mubr.f32.gmra.mxu0 %v1161
        %v1264 = vpop.f32.mrf.mxu0
        %v1265 = vadd.f32 0.0, %v1264
        %v1266 = vpop.f32.mrf.mxu0
        %1267 = vmatprep.mubr.f32.mxu0 0.0
        %1268 = vmatmul.mubr.f32.gmra.mxu0 %v1162
        %v1269 = vpop.f32.mrf.mxu0
        %v1270 = vadd.f32 0.0, %v1269
        %v1271 = vpop.f32.mrf.mxu0
        %1272 = vmatprep.mubr.f32.mxu0 0.0
        %1273 = vmatmul.mubr.f32.gmra.mxu0 %v1163
        %v1274 = vpop.f32.mrf.mxu0
        %v1275 = vadd.f32 0.0, %v1274
        %v1276 = vpop.f32.mrf.mxu0
        %1277 = vmatprep.mubr.f32.mxu0 0.0
        %1278 = vmatmul.mubr.f32.gmra.mxu0 %v1164
        %v1279 = vpop.f32.mrf.mxu0
        %v1280 = vadd.f32 0.0, %v1279
        %v1281 = vpop.f32.mrf.mxu0
        %1282 = vmatprep.mubr.f32.mxu0 0.0
        %1283 = vmatmul.mubr.f32.gmra.mxu0 %v1165
        %v1284 = vpop.f32.mrf.mxu0
        %v1285 = vadd.f32 0.0, %v1284
        %v1286 = vpop.f32.mrf.mxu0
        %1287 = vdwg.mxu0
        %v1288 = vadd.f32 %v1150, %v1250
        %v1289 = vadd.f32 %v1151, %v1255
        %v1290 = vadd.f32 %v1152, %v1260
        %v1291 = vadd.f32 %v1153, %v1265
        %v1292 = vadd.f32 %v1154, %v1270
        %v1293 = vadd.f32 %v1155, %v1275
        %v1294 = vadd.f32 %v1156, %v1280
        %v1295 = vadd.f32 %v1157, %v1285
        %v1296 = vld [vmem:[%s319] sm:$0xff]
        %v1297 = vld [vmem:[%s319 + $0x10] sm:$0xff]
        %v1298 = vld [vmem:[%s319 + $0x20] sm:$0xff]
        %v1299 = vld [vmem:[%s319 + $0x30] sm:$0xff]
        %v1300 = vld [vmem:[%s319 + $0x40] sm:$0xff]
        %v1301 = vld [vmem:[%s319 + $0x50] sm:$0xff]
        %v1302 = vld [vmem:[%s319 + $0x60] sm:$0xff]
        %v1303 = vld [vmem:[%s319 + $0x70] sm:$0xff]
        %s1304 = scalar_lea.vmem [#allocation6], 896
        %v1305 = vld [vmem:[%s1304] sm:$0xff]
        %v1306 = vld [vmem:[%s1304 + $0x8] sm:$0xff]
        %v1307 = vld [vmem:[%s1304 + $0x10] sm:$0xff]
        %v1308 = vld [vmem:[%s1304 + $0x18] sm:$0xff]
        %v1309 = vld [vmem:[%s1304 + $0x20] sm:$0xff]
        %v1310 = vld [vmem:[%s1304 + $0x28] sm:$0xff]
        %v1311 = vld [vmem:[%s1304 + $0x30] sm:$0xff]
        %v1312 = vld [vmem:[%s1304 + $0x38] sm:$0xff]
        %v1313 = vld [vmem:[%s1304 + $0x40] sm:$0xff]
        %v1314 = vld [vmem:[%s1304 + $0x48] sm:$0xff]
        %v1315 = vld [vmem:[%s1304 + $0x50] sm:$0xff]
        %v1316 = vld [vmem:[%s1304 + $0x58] sm:$0xff]
        %v1317 = vld [vmem:[%s1304 + $0x60] sm:$0xff]
        %v1318 = vld [vmem:[%s1304 + $0x68] sm:$0xff]
        %v1319 = vld [vmem:[%s1304 + $0x70] sm:$0xff]
        %v1320 = vld [vmem:[%s1304 + $0x78] sm:$0xff]
        %1321 = vmatprep.subr.mxu0 0.0
        %1322 = vmatpush1.msra.mxu0 %v1320
        %1323 = vmatprep.subr.mxu0 0.0
        %1324 = vmatpush1.msra.mxu0 %v1319
        %1325 = vmatprep.subr.mxu0 0.0
        %1326 = vmatpush1.msra.mxu0 %v1318
        %1327 = vmatprep.subr.mxu0 0.0
        %1328 = vmatpush1.msra.mxu0 %v1317
        %1329 = vmatprep.subr.mxu0 0.0
        %1330 = vmatpush1.msra.mxu0 %v1316
        %1331 = vmatprep.subr.mxu0 0.0
        %1332 = vmatpush1.msra.mxu0 %v1315
        %1333 = vmatprep.subr.mxu0 0.0
        %1334 = vmatpush1.msra.mxu0 %v1314
        %1335 = vmatprep.subr.mxu0 0.0
        %1336 = vmatpush1.msra.mxu0 %v1313
        %1337 = vmatprep.subr.mxu0 0.0
        %1338 = vmatpush1.msra.mxu0 %v1312
        %1339 = vmatprep.subr.mxu0 0.0
        %1340 = vmatpush1.msra.mxu0 %v1311
        %1341 = vmatprep.subr.mxu0 0.0
        %1342 = vmatpush1.msra.mxu0 %v1310
        %1343 = vmatprep.subr.mxu0 0.0
        %1344 = vmatpush1.msra.mxu0 %v1309
        %1345 = vmatprep.subr.mxu0 0.0
        %1346 = vmatpush1.msra.mxu0 %v1308
        %1347 = vmatprep.subr.mxu0 0.0
        %1348 = vmatpush1.msra.mxu0 %v1307
        %1349 = vmatprep.subr.mxu0 0.0
        %1350 = vmatpush1.msra.mxu0 %v1306
        %1351 = vmatprep.subr.mxu0 0.0
        %1352 = vmatpush1.msra.mxu0 %v1305
        %1353 = vmatprep.subr.mxu0 0.0
        %1354 = vmatpush2.msra.mxu0 0.0
        %1355 = vmatprep.subr.mxu0 0.0
        %1356 = vmatpush2.msra.mxu0 0.0
        %1357 = vmatprep.subr.mxu0 0.0
        %1358 = vmatpush2.msra.mxu0 0.0
        %1359 = vmatprep.subr.mxu0 0.0
        %1360 = vmatpush2.msra.mxu0 0.0
        %1361 = vmatprep.subr.mxu0 0.0
        %1362 = vmatpush2.msra.mxu0 0.0
        %1363 = vmatprep.subr.mxu0 0.0
        %1364 = vmatpush2.msra.mxu0 0.0
        %1365 = vmatprep.subr.mxu0 0.0
        %1366 = vmatpush2.msra.mxu0 0.0
        %1367 = vmatprep.subr.mxu0 0.0
        %1368 = vmatpush2.msra.mxu0 0.0
        %1369 = vmatprep.subr.mxu0 0.0
        %1370 = vmatpush2.msra.mxu0 0.0
        %1371 = vmatprep.subr.mxu0 0.0
        %1372 = vmatpush2.msra.mxu0 0.0
        %1373 = vmatprep.subr.mxu0 0.0
        %1374 = vmatpush2.msra.mxu0 0.0
        %1375 = vmatprep.subr.mxu0 0.0
        %1376 = vmatpush2.msra.mxu0 0.0
        %1377 = vmatprep.subr.mxu0 0.0
        %1378 = vmatpush2.msra.mxu0 0.0
        %1379 = vmatprep.subr.mxu0 0.0
        %1380 = vmatpush2.msra.mxu0 0.0
        %1381 = vmatprep.subr.mxu0 0.0
        %1382 = vmatpush2.msra.mxu0 0.0
        %1383 = vmatprep.subr.mxu0 0.0
        %1384 = vmatpush2.msra.mxu0 0.0
        %1385 = vmatprep.mubr.f32.mxu0 0.0
        %1386 = vmatmul.mubr.f32.gmra.mxu0 %v1296
        %v1387 = vpop.f32.mrf.mxu0
        %v1388 = vadd.f32 0.0, %v1387
        %v1389 = vpop.f32.mrf.mxu0
        %1390 = vmatprep.mubr.f32.mxu0 0.0
        %1391 = vmatmul.mubr.f32.gmra.mxu0 %v1297
        %v1392 = vpop.f32.mrf.mxu0
        %v1393 = vadd.f32 0.0, %v1392
        %v1394 = vpop.f32.mrf.mxu0
        %1395 = vmatprep.mubr.f32.mxu0 0.0
        %1396 = vmatmul.mubr.f32.gmra.mxu0 %v1298
        %v1397 = vpop.f32.mrf.mxu0
        %v1398 = vadd.f32 0.0, %v1397
        %v1399 = vpop.f32.mrf.mxu0
        %1400 = vmatprep.mubr.f32.mxu0 0.0
        %1401 = vmatmul.mubr.f32.gmra.mxu0 %v1299
        %v1402 = vpop.f32.mrf.mxu0
        %v1403 = vadd.f32 0.0, %v1402
        %v1404 = vpop.f32.mrf.mxu0
        %1405 = vmatprep.mubr.f32.mxu0 0.0
        %1406 = vmatmul.mubr.f32.gmra.mxu0 %v1300
        %v1407 = vpop.f32.mrf.mxu0
        %v1408 = vadd.f32 0.0, %v1407
        %v1409 = vpop.f32.mrf.mxu0
        %1410 = vmatprep.mubr.f32.mxu0 0.0
        %1411 = vmatmul.mubr.f32.gmra.mxu0 %v1301
        %v1412 = vpop.f32.mrf.mxu0
        %v1413 = vadd.f32 0.0, %v1412
        %v1414 = vpop.f32.mrf.mxu0
        %1415 = vmatprep.mubr.f32.mxu0 0.0
        %1416 = vmatmul.mubr.f32.gmra.mxu0 %v1302
        %v1417 = vpop.f32.mrf.mxu0
        %v1418 = vadd.f32 0.0, %v1417
        %v1419 = vpop.f32.mrf.mxu0
        %1420 = vmatprep.mubr.f32.mxu0 0.0
        %1421 = vmatmul.mubr.f32.gmra.mxu0 %v1303
        %v1422 = vpop.f32.mrf.mxu0
        %v1423 = vadd.f32 0.0, %v1422
        %v1424 = vpop.f32.mrf.mxu0
        %1425 = vdwg.mxu0
        %v1426 = vadd.f32 %v1288, %v1388
        %v1427 = vadd.f32 %v1289, %v1393
        %v1428 = vadd.f32 %v1290, %v1398
        %v1429 = vadd.f32 %v1291, %v1403
        %v1430 = vadd.f32 %v1292, %v1408
        %v1431 = vadd.f32 %v1293, %v1413
        %v1432 = vadd.f32 %v1294, %v1418
        %v1433 = vadd.f32 %v1295, %v1423
        %v1434 = vld [vmem:[%s337 + $0x1] sm:$0xff]
        %v1435 = vld [vmem:[%s337 + $0x11] sm:$0xff]
        %v1436 = vld [vmem:[%s337 + $0x21] sm:$0xff]
        %v1437 = vld [vmem:[%s337 + $0x31] sm:$0xff]
        %v1438 = vld [vmem:[%s337 + $0x41] sm:$0xff]
        %v1439 = vld [vmem:[%s337 + $0x51] sm:$0xff]
        %v1440 = vld [vmem:[%s337 + $0x61] sm:$0xff]
        %v1441 = vld [vmem:[%s337 + $0x71] sm:$0xff]
        %s1442 = scalar_lea.vmem [#allocation6], 1024
        %v1443 = vld [vmem:[%s1442] sm:$0xff]
        %v1444 = vld [vmem:[%s1442 + $0x8] sm:$0xff]
        %v1445 = vld [vmem:[%s1442 + $0x10] sm:$0xff]
        %v1446 = vld [vmem:[%s1442 + $0x18] sm:$0xff]
        %v1447 = vld [vmem:[%s1442 + $0x20] sm:$0xff]
        %v1448 = vld [vmem:[%s1442 + $0x28] sm:$0xff]
        %v1449 = vld [vmem:[%s1442 + $0x30] sm:$0xff]
        %v1450 = vld [vmem:[%s1442 + $0x38] sm:$0xff]
        %v1451 = vld [vmem:[%s1442 + $0x40] sm:$0xff]
        %v1452 = vld [vmem:[%s1442 + $0x48] sm:$0xff]
        %v1453 = vld [vmem:[%s1442 + $0x50] sm:$0xff]
        %v1454 = vld [vmem:[%s1442 + $0x58] sm:$0xff]
        %v1455 = vld [vmem:[%s1442 + $0x60] sm:$0xff]
        %v1456 = vld [vmem:[%s1442 + $0x68] sm:$0xff]
        %v1457 = vld [vmem:[%s1442 + $0x70] sm:$0xff]
        %v1458 = vld [vmem:[%s1442 + $0x78] sm:$0xff]
        %1459 = vmatprep.subr.mxu0 0.0
        %1460 = vmatpush1.msra.mxu0 %v1458
        %1461 = vmatprep.subr.mxu0 0.0
        %1462 = vmatpush1.msra.mxu0 %v1457
        %1463 = vmatprep.subr.mxu0 0.0
        %1464 = vmatpush1.msra.mxu0 %v1456
        %1465 = vmatprep.subr.mxu0 0.0
        %1466 = vmatpush1.msra.mxu0 %v1455
        %1467 = vmatprep.subr.mxu0 0.0
        %1468 = vmatpush1.msra.mxu0 %v1454
        %1469 = vmatprep.subr.mxu0 0.0
        %1470 = vmatpush1.msra.mxu0 %v1453
        %1471 = vmatprep.subr.mxu0 0.0
        %1472 = vmatpush1.msra.mxu0 %v1452
        %1473 = vmatprep.subr.mxu0 0.0
        %1474 = vmatpush1.msra.mxu0 %v1451
        %1475 = vmatprep.subr.mxu0 0.0
        %1476 = vmatpush1.msra.mxu0 %v1450
        %1477 = vmatprep.subr.mxu0 0.0
        %1478 = vmatpush1.msra.mxu0 %v1449
        %1479 = vmatprep.subr.mxu0 0.0
        %1480 = vmatpush1.msra.mxu0 %v1448
        %1481 = vmatprep.subr.mxu0 0.0
        %1482 = vmatpush1.msra.mxu0 %v1447
        %1483 = vmatprep.subr.mxu0 0.0
        %1484 = vmatpush1.msra.mxu0 %v1446
        %1485 = vmatprep.subr.mxu0 0.0
        %1486 = vmatpush1.msra.mxu0 %v1445
        %1487 = vmatprep.subr.mxu0 0.0
        %1488 = vmatpush1.msra.mxu0 %v1444
        %1489 = vmatprep.subr.mxu0 0.0
        %1490 = vmatpush1.msra.mxu0 %v1443
        %1491 = vmatprep.subr.mxu0 0.0
        %1492 = vmatpush2.msra.mxu0 0.0
        %1493 = vmatprep.subr.mxu0 0.0
        %1494 = vmatpush2.msra.mxu0 0.0
        %1495 = vmatprep.subr.mxu0 0.0
        %1496 = vmatpush2.msra.mxu0 0.0
        %1497 = vmatprep.subr.mxu0 0.0
        %1498 = vmatpush2.msra.mxu0 0.0
        %1499 = vmatprep.subr.mxu0 0.0
        %1500 = vmatpush2.msra.mxu0 0.0
        %1501 = vmatprep.subr.mxu0 0.0
        %1502 = vmatpush2.msra.mxu0 0.0
        %1503 = vmatprep.subr.mxu0 0.0
        %1504 = vmatpush2.msra.mxu0 0.0
        %1505 = vmatprep.subr.mxu0 0.0
        %1506 = vmatpush2.msra.mxu0 0.0
        %1507 = vmatprep.subr.mxu0 0.0
        %1508 = vmatpush2.msra.mxu0 0.0
        %1509 = vmatprep.subr.mxu0 0.0
        %1510 = vmatpush2.msra.mxu0 0.0
        %1511 = vmatprep.subr.mxu0 0.0
        %1512 = vmatpush2.msra.mxu0 0.0
        %1513 = vmatprep.subr.mxu0 0.0
        %1514 = vmatpush2.msra.mxu0 0.0
        %1515 = vmatprep.subr.mxu0 0.0
        %1516 = vmatpush2.msra.mxu0 0.0
        %1517 = vmatprep.subr.mxu0 0.0
        %1518 = vmatpush2.msra.mxu0 0.0
        %1519 = vmatprep.subr.mxu0 0.0
        %1520 = vmatpush2.msra.mxu0 0.0
        %1521 = vmatprep.subr.mxu0 0.0
        %1522 = vmatpush2.msra.mxu0 0.0
        %1523 = vmatprep.mubr.f32.mxu0 0.0
        %1524 = vmatmul.mubr.f32.gmra.mxu0 %v1434
        %v1525 = vpop.f32.mrf.mxu0
        %v1526 = vadd.f32 0.0, %v1525
        %v1527 = vpop.f32.mrf.mxu0
        %1528 = vmatprep.mubr.f32.mxu0 0.0
        %1529 = vmatmul.mubr.f32.gmra.mxu0 %v1435
        %v1530 = vpop.f32.mrf.mxu0
        %v1531 = vadd.f32 0.0, %v1530
        %v1532 = vpop.f32.mrf.mxu0
        %1533 = vmatprep.mubr.f32.mxu0 0.0
        %1534 = vmatmul.mubr.f32.gmra.mxu0 %v1436
        %v1535 = vpop.f32.mrf.mxu0
        %v1536 = vadd.f32 0.0, %v1535
        %v1537 = vpop.f32.mrf.mxu0
        %1538 = vmatprep.mubr.f32.mxu0 0.0
        %1539 = vmatmul.mubr.f32.gmra.mxu0 %v1437
        %v1540 = vpop.f32.mrf.mxu0
        %v1541 = vadd.f32 0.0, %v1540
        %v1542 = vpop.f32.mrf.mxu0
        %1543 = vmatprep.mubr.f32.mxu0 0.0
        %1544 = vmatmul.mubr.f32.gmra.mxu0 %v1438
        %v1545 = vpop.f32.mrf.mxu0
        %v1546 = vadd.f32 0.0, %v1545
        %v1547 = vpop.f32.mrf.mxu0
        %1548 = vmatprep.mubr.f32.mxu0 0.0
        %1549 = vmatmul.mubr.f32.gmra.mxu0 %v1439
        %v1550 = vpop.f32.mrf.mxu0
        %v1551 = vadd.f32 0.0, %v1550
        %v1552 = vpop.f32.mrf.mxu0
        %1553 = vmatprep.mubr.f32.mxu0 0.0
        %1554 = vmatmul.mubr.f32.gmra.mxu0 %v1440
        %v1555 = vpop.f32.mrf.mxu0
        %v1556 = vadd.f32 0.0, %v1555
        %v1557 = vpop.f32.mrf.mxu0
        %1558 = vmatprep.mubr.f32.mxu0 0.0
        %1559 = vmatmul.mubr.f32.gmra.mxu0 %v1441
        %v1560 = vpop.f32.mrf.mxu0
        %v1561 = vadd.f32 0.0, %v1560
        %v1562 = vpop.f32.mrf.mxu0
        %1563 = vdwg.mxu0
        %v1564 = vadd.f32 %v1426, %v1526
        %v1565 = vadd.f32 %v1427, %v1531
        %v1566 = vadd.f32 %v1428, %v1536
        %v1567 = vadd.f32 %v1429, %v1541
        %v1568 = vadd.f32 %v1430, %v1546
        %v1569 = vadd.f32 %v1431, %v1551
        %v1570 = vadd.f32 %v1432, %v1556
        %v1571 = vadd.f32 %v1433, %v1561
        %v1572 = vld [vmem:[%s2] sm:$0x1]
        %v1574 = vlaneseq
        %v1575 = vshrl.u32 %v1574, 7
        %v1576 = vsub.s32 0, %v1575
        %v1577 = vrot.slane %v1572, %v1576
        %v1579 = vadd.f32 %v1564, %v1577
        %v1580 = vadd.f32 %v1565, %v1577
        %v1581 = vadd.f32 %v1566, %v1577
        %v1582 = vadd.f32 %v1567, %v1577
        %v1583 = vadd.f32 %v1568, %v1577
        %v1584 = vadd.f32 %v1569, %v1577
        %v1585 = vadd.f32 %v1570, %v1577
        %v1586 = vadd.f32 %v1571, %v1577
        %vm1587 = vcmp.ge.f32.partialorder %v1579, 0.0
        %vm1588 = vcmp.ge.f32.partialorder %v1580, 0.0
        %vm1589 = vcmp.ge.f32.partialorder %v1581, 0.0
        %vm1590 = vcmp.ge.f32.partialorder %v1582, 0.0
        %vm1591 = vcmp.ge.f32.partialorder %v1583, 0.0
        %vm1592 = vcmp.ge.f32.partialorder %v1584, 0.0
        %vm1593 = vcmp.ge.f32.partialorder %v1585, 0.0
        %vm1594 = vcmp.ge.f32.partialorder %v1586, 0.0
        %v1595 = vmul.f32 %v1579, 0.1
        %v1596 = vmul.f32 %v1580, 0.1
        %v1597 = vmul.f32 %v1581, 0.1
        %v1598 = vmul.f32 %v1582, 0.1
        %v1599 = vmul.f32 %v1583, 0.1
        %v1600 = vmul.f32 %v1584, 0.1
        %v1601 = vmul.f32 %v1585, 0.1
        %v1602 = vmul.f32 %v1586, 0.1
        %v1603 = vsel %vm1587, %v1579, %v1595
        %v1604 = vsel %vm1588, %v1580, %v1596
        %v1605 = vsel %vm1589, %v1581, %v1597
        %v1606 = vsel %vm1590, %v1582, %v1598
        %v1607 = vsel %vm1591, %v1583, %v1599
        %v1608 = vsel %vm1592, %v1584, %v1600
        %v1609 = vsel %vm1593, %v1585, %v1601
        %v1610 = vsel %vm1594, %v1586, %v1602
        %1611 = vst [vmem:[%s203] sm:$0xff] %v1603
        %1612 = vst [vmem:[%s203 + $0x8] sm:$0xff] %v1604
        %1613 = vst [vmem:[%s203 + $0x10] sm:$0xff] %v1605
        %1614 = vst [vmem:[%s203 + $0x18] sm:$0xff] %v1606
        %1615 = vst [vmem:[%s203 + $0x20] sm:$0xff] %v1607
        %1616 = vst [vmem:[%s203 + $0x28] sm:$0xff] %v1608
        %1617 = vst [vmem:[%s203 + $0x30] sm:$0xff] %v1609
        %1618 = vst [vmem:[%s203 + $0x38] sm:$0xff] %v1610
        %s1619 = sand.u32 %s97, 1
        %s1620 = scalar_lea.sflag [#allocation5], %s1619
        %s1621 = sand.u32 %s97, 1
        %s1622 = smul.addr %s1621, 64
        %s1623 = scalar_lea.vmem [#allocation8], %s1622
        // Predicated region
        $region41: #{tpu_custom_call.1} parent=31 // pred_check
          %p1624 = pneg %p107
        $region42: #{tpu_custom_call.1} parent=31 // pred_check_branch
          %1626 = sbr.rel (%p1624) target = $region44
        $region43: #{tpu_custom_call.1} parent=31 // pred_region
          %s1628 = ssub.s32 1024, 1024
          %1629 = vsyncadd %s1620, %s1628
          %s1630 = smul.addr %s21, 8
          %s1631 = smul.addr %s1630, 128
          %s1632 = scalar_lea.hbm %s3, %s1631
          %s1633 = sshll.u32 %s1623, 4
          %s1634 = int_to_ptr.vmem [resolvable:$true] %s1633
          %1639 = dma.vmem_to_hbm [thread:$0]  %s1634, 1024, %s1632, %s1620, 128, 128, 8
        $region44: #{tpu_custom_call.1} parent=31 // pred_fallthru
          _
      $region32: #{tpu_custom_call.1} parent=5 // pred_fallthru
        _
      %p1640 = scmp.le.s32.totalorder 2, %s16
      // Predicated region
      $region45: #{tpu_custom_call.1} parent=5 // pred_check
        %p1641 = pneg %p1640
      $region46: #{tpu_custom_call.1} parent=5 // pred_check_branch
        %1643 = sbr.rel (%p1641) target = $region48
      $region47: #{tpu_custom_call.1} parent=5 // pred_region
        %s1644 = ssub.s32 %s16, 2
        // Predicated region
        $region49: #{tpu_custom_call.1} parent=47 // pred_check
          %p1645 = pneg %p113
        $region50: #{tpu_custom_call.1} parent=47 // pred_check_branch
          %1647 = sbr.rel (%p1645) target = $region52
        $region51: #{tpu_custom_call.1} parent=47 // pred_region
          %s1648 = sand.u32 %s98, 1
          %s1649 = scalar_lea.sflag [#allocation5], %s1648
          %s1650 = sand.u32 %s98, 1
          %s1651 = smul.addr %s1650, 64
          %s1652 = scalar_lea.vmem [#allocation8], %s1651
          %1653 = dma.done %s1649, 1024
        $region52: #{tpu_custom_call.1} parent=47 // pred_fallthru
          _
      $region48: #{tpu_custom_call.1} parent=5 // pred_fallthru
        _
    $region6: #{tpu_custom_call.1} parent=1 // loop_footer
      %s20 = sadd.s32 1, %s16
    $region7: #{tpu_custom_call.1} parent=1 // loop_footer_branch
      %15 = sbr.rel target = $region3
    $region8: #{tpu_custom_call.1} parent=1 // loop_exit
      _
    %1654 = vsyncpa [#allocation4], 1
    %s1655 = scalar_lea.sflag [#allocation4], 1
    %1656 = vsyncpa %s1655, 1
    %1657 = vsyncpa [#allocation7], 1
    %1658 = vsyncpa [#allocation5], 1
    %s1659 = scalar_lea.sflag [#allocation5], 1
    %1660 = vsyncpa %s1659, 1

</llo_original>
